<compile_context>
chip_gen: v7x
topology: tpu7x:2x2x1
jax: 0.10.0
libtpu: 0.0.40
codegen_flags: <defaults>
</compile_context>

<pallas_src>
import functools

import jax
import jax.numpy as jnp
from jax import lax
from jax.experimental import pallas as pl
from jax.experimental.pallas import tpu as pltpu

BN_EPS = 1e-5
LEAKY_SLOPE = 0.01          # torch.nn.LeakyReLU() default negative_slope
KSIZE = 4
LANE = 128

# Static per-layer configuration (stride, padding, activation, BatchNorm).
LAYER_NAMES = ("l0", "l1", "l2", "l3", "l4")
LAYER_CONFIG = (
    dict(stride=2, padding=1, act="leaky_relu", use_bn=False),
    dict(stride=2, padding=1, act="relu",       use_bn=True),
    dict(stride=2, padding=1, act="relu",       use_bn=True),
    dict(stride=1, padding=1, act="relu",       use_bn=True),
    dict(stride=1, padding=1, act="none",       use_bn=False),
)


def _round_up(x, m):
    return (x + m - 1) // m * m


def _apply_act(y, act):
    if act == "relu":
        return jnp.maximum(y, 0.0)
    if act == "leaky_relu":
        return jnp.where(y >= 0.0, y, LEAKY_SLOPE * y)
    return y


# --------------------------------------------------------------------------
# Fused layer kernels.
# --------------------------------------------------------------------------
def _conv_bn_relu_kernel(a_ref, w_ref, gb_ref, o_ref, *, inv_m):
    # GEMM on the MXU (bf16 x bf16 -> f32 accumulation).  No conv bias: it is
    # exactly cancelled by training-mode BatchNorm mean subtraction, and its
    # absence keeps padded rows/columns of y identically zero.
    y = jnp.dot(a_ref[...], w_ref[...], preferred_element_type=jnp.float32)
    # Unmasked single-pass batch statistics: padded rows contribute exactly
    # zero, so plain sums scaled by 1/M_real are exact.
    mean = jnp.sum(y, axis=0, keepdims=True) * inv_m
    mean_sq = jnp.sum(y * y, axis=0, keepdims=True) * inv_m
    var = mean_sq - mean * mean
    scale = gb_ref[0:1, :] * lax.rsqrt(var + BN_EPS)      # gamma / sqrt(var+eps)
    shift = gb_ref[1:2, :] - mean * scale                 # beta - mean*scale
    o_ref[...] = jnp.maximum(y * scale + shift, 0.0).astype(o_ref.dtype)


def _conv_bias_act_kernel(a_ref, w_ref, b_ref, o_ref, *, act):
    y = jnp.dot(a_ref[...], w_ref[...], preferred_element_type=jnp.float32)
    y = y + b_ref[...]
    o_ref[...] = _apply_act(y, act).astype(o_ref.dtype)


# --------------------------------------------------------------------------
# Glue: im2col patch extraction (plain JAX, cheap at these sizes).
# --------------------------------------------------------------------------
def _im2col(x, k, stride):
    N, H, W, C = x.shape
    Ho = (H - k) // stride + 1
    Wo = (W - k) // stride + 1
    cols = []
    for i in range(k):
        for j in range(k):
            cols.append(x[:, i:i + stride * (Ho - 1) + 1:stride,
                            j:j + stride * (Wo - 1) + 1:stride, :])
    patches = jnp.concatenate(cols, axis=-1)       # (N, Ho, Wo, k*k*C)
    return patches.reshape(N * Ho * Wo, k * k * C), (N, Ho, Wo)


# --------------------------------------------------------------------------
# One-time parameter preparation (hoisted out of the per-step forward).
# --------------------------------------------------------------------------
def prepare_params(raw_params):
    """Re-layout PyTorch-style params into GEMM-ready, lane-padded operands.

    Returns (gemm_params, metas):
      gemm_params: list of dicts of jnp arrays (valid jit pytree).
      metas:       tuple of static per-layer config dicts (closed over).
    """
    gemm_params, metas = [], []
    for name, cfg in zip(LAYER_NAMES, LAYER_CONFIG):
        p = raw_params[name]
        w = p["w"]                                   # (O, Cin, kh, kw)
        O, Cin, kh, kw = w.shape
        K = kh * kw * Cin
        Kp = _round_up(K, LANE)
        Np = _round_up(O, LANE)
        w_mat = jnp.transpose(w, (2, 3, 1, 0)).reshape(K, O).astype(jnp.bfloat16)
        arrs = {"w": jnp.pad(w_mat, ((0, Kp - K), (0, Np - O)))}
        if cfg["use_bn"]:
            # Conv bias intentionally dropped (cancelled by BN mean subtraction,
            # training mode).  gamma/beta packed into one (2, Np) operand.
            gb = jnp.stack([p["gamma"], p["beta"]], axis=0).astype(jnp.float32)
            arrs["gb"] = jnp.pad(gb, ((0, 0), (0, Np - O)))
        else:
            b = p["b"].reshape(1, O).astype(jnp.float32)
            arrs["bias"] = jnp.pad(b, ((0, 0), (0, Np - O)))
        gemm_params.append(arrs)
        meta = dict(cfg)
        meta["out_channels"] = O
        meta["out_dtype"] = jnp.float32 if name == "l4" else jnp.bfloat16
        metas.append(meta)
    return gemm_params, tuple(metas)


# --------------------------------------------------------------------------
# One fused conv layer.
# --------------------------------------------------------------------------
def _conv_layer(x, arrs, meta):
    """x: NHWC activations (bf16).  Returns NHWC activations."""
    stride, pad = meta["stride"], meta["padding"]
    O = meta["out_channels"]
    w_p = arrs["w"]
    Kp, Np = w_p.shape

    if pad:
        x = jnp.pad(x, ((0, 0), (pad, pad), (pad, pad), (0, 0)))
    patches, (N, Ho, Wo) = _im2col(x, KSIZE, stride)
    patches = patches.astype(jnp.bfloat16)
    M, K = patches.shape

    if meta["use_bn"]:
        # Whole-slab: training-mode BN statistics need the full M extent.
        # TODO(synk): production sizes need an M-tiled two-pass BN scheme.
        tm = _round_up(max(M, 16), 16)
        Mp = tm
        grid = (1,)
        dims = ("arbitrary",)
    else:
        tm = 256 if M > 256 else _round_up(max(M, 16), 16)
        Mp = _round_up(M, tm)
        grid = (Mp // tm,)
        dims = ("parallel",)

    a_p = jnp.pad(patches, ((0, Mp - M), (0, Kp - K)))

    a_spec = pl.BlockSpec((tm, Kp), lambda i: (i, 0))
    w_spec = pl.BlockSpec((Kp, Np), lambda i: (0, 0))
    out_spec = pl.BlockSpec((tm, Np), lambda i: (i, 0))

    if meta["use_bn"]:
        kernel = functools.partial(_conv_bn_relu_kernel, inv_m=float(1.0 / M))
        inputs = (a_p, w_p, arrs["gb"])
        in_specs = [a_spec, w_spec, pl.BlockSpec((2, Np), lambda i: (0, 0))]
    else:
        kernel = functools.partial(_conv_bias_act_kernel, act=meta["act"])
        inputs = (a_p, w_p, arrs["bias"])
        in_specs = [a_spec, w_spec, pl.BlockSpec((1, Np), lambda i: (0, 0))]

    out = pl.pallas_call(
        kernel,
        out_shape=jax.ShapeDtypeStruct((Mp, Np), meta["out_dtype"]),
        grid_spec=pltpu.PrefetchScalarGridSpec(
            num_scalar_prefetch=0,
            grid=grid,
            in_specs=in_specs,
            out_specs=out_spec,
        ),
        compiler_params=pltpu.CompilerParams(
            dimension_semantics=dims,
            vmem_limit_bytes=32 * 1024 * 1024,
        ),
    )(*inputs)

    return out[:M, :O].reshape(N, Ho, Wo, O)


# --------------------------------------------------------------------------
# Discriminator forward (public interface NCHW, internal compute NHWC bf16).
# --------------------------------------------------------------------------
def discriminator_forward(x_nchw, gemm_params, *, metas):
    x = jnp.transpose(x_nchw, (0, 2, 3, 1)).astype(jnp.bfloat16)   # NCHW->NHWC
    for arrs, meta in zip(gemm_params, metas):
        x = _conv_layer(x, arrs, meta)
    return jnp.transpose(x, (0, 3, 1, 2))                          # NHWC->NCHW


# --------------------------------------------------------------------------
# Pure-JAX f32 reference (PyTorch semantics incl. conv bias) for validation.
# --------------------------------------------------------------------------
def _reference_forward(x_nchw, raw_params):
    x = jnp.transpose(x_nchw, (0, 2, 3, 1)).astype(jnp.float32)
    for name, cfg in zip(LAYER_NAMES, LAYER_CONFIG):
        p = raw_params[name]
        w = jnp.transpose(p["w"], (2, 3, 1, 0))       # (kh, kw, Cin, O)
        y = lax.conv_general_dilated(
            x, w, window_strides=(cfg["stride"],) * 2,
            padding=[(cfg["padding"],) * 2] * 2,
            dimension_numbers=("NHWC", "HWIO", "NHWC"))
        y = y + p["b"]
        if cfg["use_bn"]:
            mean = jnp.mean(y, axis=(0, 1, 2), keepdims=True)
            var = jnp.mean(jnp.square(y - mean), axis=(0, 1, 2), keepdims=True)
            y = (y - mean) * lax.rsqrt(var + BN_EPS) * p["gamma"] + p["beta"]
        y = _apply_act(y, cfg["act"])
        x = y
    return jnp.transpose(x, (0, 3, 1, 2))


# --------------------------------------------------------------------------
# Deterministic parameter init (shapes per the PyTorch module __init__).
# --------------------------------------------------------------------------
def init_params(key, input_channels=3, filters=8):
    keys = iter(jax.random.split(key, 32))

    def conv_p(cin, cout, k):
        bound = 1.0 / float(cin * k * k) ** 0.5
        w = jax.random.uniform(next(keys), (cout, cin, k, k), jnp.float32,
                               -bound, bound)
        b = jax.random.uniform(next(keys), (cout,), jnp.float32, -bound, bound)
        return w, b

    f = filters
    specs = [("l0", input_channels, f, False),
             ("l1", f, 2 * f, True),
             ("l2", 2 * f, 4 * f, True),
             ("l3", 4 * f, 8 * f, True),
             ("l4", 8 * f, 1, False)]
    params = {}
    for name, cin, cout, has_bn in specs:
        w, b = conv_p(cin, cout, KSIZE)
        p = {"w": w, "b": b}
        if has_bn:
            p["gamma"] = jnp.ones((cout,), jnp.float32)
            p["beta"] = jnp.zeros((cout,), jnp.float32)
        params[name] = p
    return params


if __name__ == "__main__":
    key = jax.random.PRNGKey(0)
    pkey, xkey = jax.random.split(key)
    filters = 8                     # small config; same topology as (3, 64)
    raw_params = init_params(pkey, input_channels=3, filters=filters)
    gemm_params, metas = prepare_params(raw_params)   # one-time prep (hoisted)
    x = jax.random.normal(xkey, (2, 3, 32, 32), jnp.float32)   # NCHW like PyTorch

    fwd = jax.jit(functools.partial(discriminator_forward, metas=metas))
    out = fwd(x, gemm_params)
    jax.block_until_ready(out)

    # 32 -> 16 -> 8 -> 4 -> 3 -> 2 spatial; final channel count = 1.
    assert out.shape == (2, 1, 2, 2), out.shape
    assert bool(jnp.all(jnp.isfinite(out)))

    # Validate against a pure-JAX f32 reference (bf16 GEMM => loose tolerance).
    ref = _reference_forward(x, raw_params)
    err = float(jnp.max(jnp.abs(out.astype(jnp.float32) - ref)))
    tol = 0.05 + 0.05 * float(jnp.max(jnp.abs(ref)))
    assert err <= tol, (err, tol)

    print("KERNEL_OK")
</pallas_src>

<mosaic_0001>
module attributes {stable_mosaic.version = 11 : i64} {
  func.func @_conv_bias_act_kernel(%arg0: i32, %arg1: memref<256x128xbf16, #tpu.memory_space<vmem>>, %arg2: memref<128x128xbf16, #tpu.memory_space<vmem>>, %arg3: memref<1x128xf32, #tpu.memory_space<vmem>>, %arg4: memref<256x128xbf16, #tpu.memory_space<vmem>>) attributes {dimension_semantics = [#tpu.dimension_semantics<parallel>], iteration_bounds = array<i64: 2>, scalar_prefetch = 0 : i64, scratch_operands = 0 : i64, tpu.core_type = #tpu.core_type<tc>, window_params = [{transform_indices = @transform_0, window_bounds = array<i64: 256, 128>}, {pipeline_mode = #tpu.pipeline_mode<synchronous>, transform_indices = @transform_1, window_bounds = array<i64: 128, 128>}, {pipeline_mode = #tpu.pipeline_mode<synchronous>, transform_indices = @transform_2, window_bounds = array<i64: 1, 128>}, {transform_indices = @transform_3, window_bounds = array<i64: 256, 128>}]} {
    %c0 = arith.constant 0 : index
    %c0_0 = arith.constant 0 : index
    %0 = vector.load %arg1[%c0, %c0_0] : memref<256x128xbf16, #tpu.memory_space<vmem>>, vector<256x128xbf16>
    %c0_1 = arith.constant 0 : index
    %c0_2 = arith.constant 0 : index
    %1 = vector.load %arg2[%c0_1, %c0_2] : memref<128x128xbf16, #tpu.memory_space<vmem>>, vector<128x128xbf16>
    %cst = arith.constant dense<0.000000e+00> : vector<256x128xf32>
    %2 = tpu.matmul %0, %1, %cst {dimension_numbers = #tpu.dot_dimension_numbers<[1], [0], [0], [1], [0, 0, 1, 1], [], []>} : vector<256x128xbf16>, vector<128x128xbf16>, vector<256x128xf32> -> vector<256x128xf32>
    %c0_3 = arith.constant 0 : index
    %c0_4 = arith.constant 0 : index
    %3 = vector.load %arg3[%c0_3, %c0_4] : memref<1x128xf32, #tpu.memory_space<vmem>>, vector<1x128xf32>
    %4 = vector.broadcast %3 : vector<1x128xf32> to vector<256x128xf32>
    %5 = arith.addf %2, %4 : vector<256x128xf32>
    %cst_5 = arith.constant 0.000000e+00 : f32
    %6 = vector.broadcast %cst_5 : f32 to vector<256x128xf32>
    %7 = arith.cmpf oge, %5, %6 : vector<256x128xf32>
    %cst_6 = arith.constant 0.00999999977 : f32
    %8 = vector.broadcast %cst_6 : f32 to vector<256x128xf32>
    %9 = arith.mulf %8, %5 : vector<256x128xf32>
    %10 = arith.select %7, %5, %9 : vector<256x128xi1>, vector<256x128xf32>
    %11 = arith.truncf %10 : vector<256x128xf32> to vector<256x128xbf16>
    %c0_7 = arith.constant 0 : index
    %c0_8 = arith.constant 0 : index
    %12 = vector.load %arg4[%c0_7, %c0_8] : memref<256x128xbf16, #tpu.memory_space<vmem>>, vector<256x128xbf16>
    tpu.vector_store %arg4[%c0_7, %c0_8], %11 {strides = array<i32>} : memref<256x128xbf16, #tpu.memory_space<vmem>>, vector<256x128xbf16>,
    return
  }
  func.func @transform_0(%arg0: i32) -> (i32, i32) {
    %c0_i32 = arith.constant 0 : i32
    %c0_i32_0 = arith.constant 0 : i32
    return %arg0, %c0_i32 : i32, i32
  }
  func.func @transform_1(%arg0: i32) -> (i32, i32) {
    %c0_i32 = arith.constant 0 : i32
    %c0_i32_0 = arith.constant 0 : i32
    %c0_i32_1 = arith.constant 0 : i32
    return %c0_i32, %c0_i32_0 : i32, i32
  }
  func.func @transform_2(%arg0: i32) -> (i32, i32) {
    %c0_i32 = arith.constant 0 : i32
    %c0_i32_0 = arith.constant 0 : i32
    %c0_i32_1 = arith.constant 0 : i32
    return %c0_i32, %c0_i32_0 : i32, i32
  }
  func.func @transform_3(%arg0: i32) -> (i32, i32) {
    %c0_i32 = arith.constant 0 : i32
    %c0_i32_0 = arith.constant 0 : i32
    return %arg0, %c0_i32 : i32, i32
  }
}

module attributes {stable_mosaic.version = 11 : i64} {
  func.func @_conv_bn_relu_kernel(%arg0: i32, %arg1: memref<128x128xbf16, #tpu.memory_space<vmem>>, %arg2: memref<128x128xbf16, #tpu.memory_space<vmem>>, %arg3: memref<2x128xf32, #tpu.memory_space<vmem>>, %arg4: memref<128x128xbf16, #tpu.memory_space<vmem>>) attributes {dimension_semantics = [#tpu.dimension_semantics<arbitrary>], iteration_bounds = array<i64: 1>, scalar_prefetch = 0 : i64, scratch_operands = 0 : i64, tpu.core_type = #tpu.core_type<tc>, window_params = [{transform_indices = @transform_0, window_bounds = array<i64: 128, 128>}, {pipeline_mode = #tpu.pipeline_mode<synchronous>, transform_indices = @transform_1, window_bounds = array<i64: 128, 128>}, {pipeline_mode = #tpu.pipeline_mode<synchronous>, transform_indices = @transform_2, window_bounds = array<i64: 2, 128>}, {transform_indices = @transform_3, window_bounds = array<i64: 128, 128>}]} {
    %c0 = arith.constant 0 : index
    %c0_0 = arith.constant 0 : index
    %0 = vector.load %arg1[%c0, %c0_0] : memref<128x128xbf16, #tpu.memory_space<vmem>>, vector<128x128xbf16>
    %c0_1 = arith.constant 0 : index
    %c0_2 = arith.constant 0 : index
    %1 = vector.load %arg2[%c0_1, %c0_2] : memref<128x128xbf16, #tpu.memory_space<vmem>>, vector<128x128xbf16>
    %cst = arith.constant dense<0.000000e+00> : vector<128x128xf32>
    %2 = tpu.matmul %0, %1, %cst {dimension_numbers = #tpu.dot_dimension_numbers<[1], [0], [0], [1], [0, 0, 1, 1], [], []>} : vector<128x128xbf16>, vector<128x128xbf16>, vector<128x128xf32> -> vector<128x128xf32>
    %cst_3 = arith.constant dense<0.000000e+00> : vector<128xf32>
    %3 = vector.multi_reduction <add>, %2, %cst_3 [0] : vector<128x128xf32> to vector<128xf32>
    %4 = vector.shape_cast %3 : vector<128xf32> to vector<1x128xf32>
    %cst_4 = arith.constant 7.812500e-03 : f32
    %5 = vector.broadcast %cst_4 : f32 to vector<1x128xf32>
    %6 = arith.mulf %4, %5 : vector<1x128xf32>
    %7 = arith.mulf %2, %2 : vector<128x128xf32>
    %cst_5 = arith.constant dense<0.000000e+00> : vector<128xf32>
    %8 = vector.multi_reduction <add>, %7, %cst_5 [0] : vector<128x128xf32> to vector<128xf32>
    %9 = vector.shape_cast %8 : vector<128xf32> to vector<1x128xf32>
    %cst_6 = arith.constant 7.812500e-03 : f32
    %10 = vector.broadcast %cst_6 : f32 to vector<1x128xf32>
    %11 = arith.mulf %9, %10 : vector<1x128xf32>
    %12 = arith.mulf %6, %6 : vector<1x128xf32>
    %13 = arith.subf %11, %12 : vector<1x128xf32>
    %c0_7 = arith.constant 0 : index
    %c0_8 = arith.constant 0 : index
    %14 = vector.load %arg3[%c0_7, %c0_8] : memref<2x128xf32, #tpu.memory_space<vmem>>, vector<1x128xf32>
    %cst_9 = arith.constant 9.99999974E-6 : f32
    %15 = vector.broadcast %cst_9 : f32 to vector<1x128xf32>
    %16 = arith.addf %13, %15 : vector<1x128xf32>
    %17 = math.rsqrt %16 : vector<1x128xf32>
    %18 = arith.mulf %14, %17 : vector<1x128xf32>
    %c1 = arith.constant 1 : index
    %c0_10 = arith.constant 0 : index
    %19 = vector.load %arg3[%c1, %c0_10] : memref<2x128xf32, #tpu.memory_space<vmem>>, vector<1x128xf32>
    %20 = arith.mulf %6, %18 : vector<1x128xf32>
    %21 = arith.subf %19, %20 : vector<1x128xf32>
    %22 = vector.broadcast %18 : vector<1x128xf32> to vector<128x128xf32>
    %23 = arith.mulf %2, %22 : vector<128x128xf32>
    %24 = vector.broadcast %21 : vector<1x128xf32> to vector<128x128xf32>
    %25 = arith.addf %23, %24 : vector<128x128xf32>
    %cst_11 = arith.constant 0.000000e+00 : f32
    %26 = vector.broadcast %cst_11 : f32 to vector<128x128xf32>
    %27 = arith.maximumf %25, %26 : vector<128x128xf32>
    %28 = arith.truncf %27 : vector<128x128xf32> to vector<128x128xbf16>
    %c0_12 = arith.constant 0 : index
    %c0_13 = arith.constant 0 : index
    %29 = vector.load %arg4[%c0_12, %c0_13] : memref<128x128xbf16, #tpu.memory_space<vmem>>, vector<128x128xbf16>
    tpu.vector_store %arg4[%c0_12, %c0_13], %28 {strides = array<i32>} : memref<128x128xbf16, #tpu.memory_space<vmem>>, vector<128x128xbf16>,
    return
  }
  func.func @transform_0(%arg0: i32) -> (i32, i32) {
    %c0_i32 = arith.constant 0 : i32
    %c0_i32_0 = arith.constant 0 : i32
    return %arg0, %c0_i32 : i32, i32
  }
  func.func @transform_1(%arg0: i32) -> (i32, i32) {
    %c0_i32 = arith.constant 0 : i32
    %c0_i32_0 = arith.constant 0 : i32
    %c0_i32_1 = arith.constant 0 : i32
    return %c0_i32, %c0_i32_0 : i32, i32
  }
  func.func @transform_2(%arg0: i32) -> (i32, i32) {
    %c0_i32 = arith.constant 0 : i32
    %c0_i32_0 = arith.constant 0 : i32
    %c0_i32_1 = arith.constant 0 : i32
    return %c0_i32, %c0_i32_0 : i32, i32
  }
  func.func @transform_3(%arg0: i32) -> (i32, i32) {
    %c0_i32 = arith.constant 0 : i32
    %c0_i32_0 = arith.constant 0 : i32
    return %arg0, %c0_i32 : i32, i32
  }
}

module attributes {stable_mosaic.version = 11 : i64} {
  func.func @_conv_bn_relu_kernel(%arg0: i32, %arg1: memref<32x256xbf16, #tpu.memory_space<vmem>>, %arg2: memref<256x128xbf16, #tpu.memory_space<vmem>>, %arg3: memref<2x128xf32, #tpu.memory_space<vmem>>, %arg4: memref<32x128xbf16, #tpu.memory_space<vmem>>) attributes {dimension_semantics = [#tpu.dimension_semantics<arbitrary>], iteration_bounds = array<i64: 1>, scalar_prefetch = 0 : i64, scratch_operands = 0 : i64, tpu.core_type = #tpu.core_type<tc>, window_params = [{transform_indices = @transform_0, window_bounds = array<i64: 32, 256>}, {pipeline_mode = #tpu.pipeline_mode<synchronous>, transform_indices = @transform_1, window_bounds = array<i64: 256, 128>}, {pipeline_mode = #tpu.pipeline_mode<synchronous>, transform_indices = @transform_2, window_bounds = array<i64: 2, 128>}, {transform_indices = @transform_3, window_bounds = array<i64: 32, 128>}]} {
    %c0 = arith.constant 0 : index
    %c0_0 = arith.constant 0 : index
    %0 = vector.load %arg1[%c0, %c0_0] : memref<32x256xbf16, #tpu.memory_space<vmem>>, vector<32x256xbf16>
    %c0_1 = arith.constant 0 : index
    %c0_2 = arith.constant 0 : index
    %1 = vector.load %arg2[%c0_1, %c0_2] : memref<256x128xbf16, #tpu.memory_space<vmem>>, vector<256x128xbf16>
    %cst = arith.constant dense<0.000000e+00> : vector<32x128xf32>
    %2 = tpu.matmul %0, %1, %cst {dimension_numbers = #tpu.dot_dimension_numbers<[1], [0], [0], [1], [0, 0, 1, 1], [], []>} : vector<32x256xbf16>, vector<256x128xbf16>, vector<32x128xf32> -> vector<32x128xf32>
    %cst_3 = arith.constant dense<0.000000e+00> : vector<128xf32>
    %3 = vector.multi_reduction <add>, %2, %cst_3 [0] : vector<32x128xf32> to vector<128xf32>
    %4 = vector.shape_cast %3 : vector<128xf32> to vector<1x128xf32>
    %cst_4 = arith.constant 3.125000e-02 : f32
    %5 = vector.broadcast %cst_4 : f32 to vector<1x128xf32>
    %6 = arith.mulf %4, %5 : vector<1x128xf32>
    %7 = arith.mulf %2, %2 : vector<32x128xf32>
    %cst_5 = arith.constant dense<0.000000e+00> : vector<128xf32>
    %8 = vector.multi_reduction <add>, %7, %cst_5 [0] : vector<32x128xf32> to vector<128xf32>
    %9 = vector.shape_cast %8 : vector<128xf32> to vector<1x128xf32>
    %cst_6 = arith.constant 3.125000e-02 : f32
    %10 = vector.broadcast %cst_6 : f32 to vector<1x128xf32>
    %11 = arith.mulf %9, %10 : vector<1x128xf32>
    %12 = arith.mulf %6, %6 : vector<1x128xf32>
    %13 = arith.subf %11, %12 : vector<1x128xf32>
    %c0_7 = arith.constant 0 : index
    %c0_8 = arith.constant 0 : index
    %14 = vector.load %arg3[%c0_7, %c0_8] : memref<2x128xf32, #tpu.memory_space<vmem>>, vector<1x128xf32>
    %cst_9 = arith.constant 9.99999974E-6 : f32
    %15 = vector.broadcast %cst_9 : f32 to vector<1x128xf32>
    %16 = arith.addf %13, %15 : vector<1x128xf32>
    %17 = math.rsqrt %16 : vector<1x128xf32>
    %18 = arith.mulf %14, %17 : vector<1x128xf32>
    %c1 = arith.constant 1 : index
    %c0_10 = arith.constant 0 : index
    %19 = vector.load %arg3[%c1, %c0_10] : memref<2x128xf32, #tpu.memory_space<vmem>>, vector<1x128xf32>
    %20 = arith.mulf %6, %18 : vector<1x128xf32>
    %21 = arith.subf %19, %20 : vector<1x128xf32>
    %22 = vector.broadcast %18 : vector<1x128xf32> to vector<32x128xf32>
    %23 = arith.mulf %2, %22 : vector<32x128xf32>
    %24 = vector.broadcast %21 : vector<1x128xf32> to vector<32x128xf32>
    %25 = arith.addf %23, %24 : vector<32x128xf32>
    %cst_11 = arith.constant 0.000000e+00 : f32
    %26 = vector.broadcast %cst_11 : f32 to vector<32x128xf32>
    %27 = arith.maximumf %25, %26 : vector<32x128xf32>
    %28 = arith.truncf %27 : vector<32x128xf32> to vector<32x128xbf16>
    %c0_12 = arith.constant 0 : index
    %c0_13 = arith.constant 0 : index
    %29 = vector.load %arg4[%c0_12, %c0_13] : memref<32x128xbf16, #tpu.memory_space<vmem>>, vector<32x128xbf16>
    tpu.vector_store %arg4[%c0_12, %c0_13], %28 {strides = array<i32>} : memref<32x128xbf16, #tpu.memory_space<vmem>>, vector<32x128xbf16>,
    return
  }
  func.func @transform_0(%arg0: i32) -> (i32, i32) {
    %c0_i32 = arith.constant 0 : i32
    %c0_i32_0 = arith.constant 0 : i32
    return %arg0, %c0_i32 : i32, i32
  }
  func.func @transform_1(%arg0: i32) -> (i32, i32) {
    %c0_i32 = arith.constant 0 : i32
    %c0_i32_0 = arith.constant 0 : i32
    %c0_i32_1 = arith.constant 0 : i32
    return %c0_i32, %c0_i32_0 : i32, i32
  }
  func.func @transform_2(%arg0: i32) -> (i32, i32) {
    %c0_i32 = arith.constant 0 : i32
    %c0_i32_0 = arith.constant 0 : i32
    %c0_i32_1 = arith.constant 0 : i32
    return %c0_i32, %c0_i32_0 : i32, i32
  }
  func.func @transform_3(%arg0: i32) -> (i32, i32) {
    %c0_i32 = arith.constant 0 : i32
    %c0_i32_0 = arith.constant 0 : i32
    return %arg0, %c0_i32 : i32, i32
  }
}

module attributes {stable_mosaic.version = 11 : i64} {
  func.func @_conv_bn_relu_kernel(%arg0: i32, %arg1: memref<32x512xbf16, #tpu.memory_space<vmem>>, %arg2: memref<512x128xbf16, #tpu.memory_space<vmem>>, %arg3: memref<2x128xf32, #tpu.memory_space<vmem>>, %arg4: memref<32x128xbf16, #tpu.memory_space<vmem>>) attributes {dimension_semantics = [#tpu.dimension_semantics<arbitrary>], iteration_bounds = array<i64: 1>, scalar_prefetch = 0 : i64, scratch_operands = 0 : i64, tpu.core_type = #tpu.core_type<tc>, window_params = [{transform_indices = @transform_0, window_bounds = array<i64: 32, 512>}, {pipeline_mode = #tpu.pipeline_mode<synchronous>, transform_indices = @transform_1, window_bounds = array<i64: 512, 128>}, {pipeline_mode = #tpu.pipeline_mode<synchronous>, transform_indices = @transform_2, window_bounds = array<i64: 2, 128>}, {transform_indices = @transform_3, window_bounds = array<i64: 32, 128>}]} {
    %c0 = arith.constant 0 : index
    %c0_0 = arith.constant 0 : index
    %0 = vector.load %arg1[%c0, %c0_0] : memref<32x512xbf16, #tpu.memory_space<vmem>>, vector<32x512xbf16>
    %c0_1 = arith.constant 0 : index
    %c0_2 = arith.constant 0 : index
    %1 = vector.load %arg2[%c0_1, %c0_2] : memref<512x128xbf16, #tpu.memory_space<vmem>>, vector<512x128xbf16>
    %cst = arith.constant dense<0.000000e+00> : vector<32x128xf32>
    %2 = tpu.matmul %0, %1, %cst {dimension_numbers = #tpu.dot_dimension_numbers<[1], [0], [0], [1], [0, 0, 1, 1], [], []>} : vector<32x512xbf16>, vector<512x128xbf16>, vector<32x128xf32> -> vector<32x128xf32>
    %cst_3 = arith.constant dense<0.000000e+00> : vector<128xf32>
    %3 = vector.multi_reduction <add>, %2, %cst_3 [0] : vector<32x128xf32> to vector<128xf32>
    %4 = vector.shape_cast %3 : vector<128xf32> to vector<1x128xf32>
    %cst_4 = arith.constant 0.055555556 : f32
    %5 = vector.broadcast %cst_4 : f32 to vector<1x128xf32>
    %6 = arith.mulf %4, %5 : vector<1x128xf32>
    %7 = arith.mulf %2, %2 : vector<32x128xf32>
    %cst_5 = arith.constant dense<0.000000e+00> : vector<128xf32>
    %8 = vector.multi_reduction <add>, %7, %cst_5 [0] : vector<32x128xf32> to vector<128xf32>
    %9 = vector.shape_cast %8 : vector<128xf32> to vector<1x128xf32>
    %cst_6 = arith.constant 0.055555556 : f32
    %10 = vector.broadcast %cst_6 : f32 to vector<1x128xf32>
    %11 = arith.mulf %9, %10 : vector<1x128xf32>
    %12 = arith.mulf %6, %6 : vector<1x128xf32>
    %13 = arith.subf %11, %12 : vector<1x128xf32>
    %c0_7 = arith.constant 0 : index
    %c0_8 = arith.constant 0 : index
    %14 = vector.load %arg3[%c0_7, %c0_8] : memref<2x128xf32, #tpu.memory_space<vmem>>, vector<1x128xf32>
    %cst_9 = arith.constant 9.99999974E-6 : f32
    %15 = vector.broadcast %cst_9 : f32 to vector<1x128xf32>
    %16 = arith.addf %13, %15 : vector<1x128xf32>
    %17 = math.rsqrt %16 : vector<1x128xf32>
    %18 = arith.mulf %14, %17 : vector<1x128xf32>
    %c1 = arith.constant 1 : index
    %c0_10 = arith.constant 0 : index
    %19 = vector.load %arg3[%c1, %c0_10] : memref<2x128xf32, #tpu.memory_space<vmem>>, vector<1x128xf32>
    %20 = arith.mulf %6, %18 : vector<1x128xf32>
    %21 = arith.subf %19, %20 : vector<1x128xf32>
    %22 = vector.broadcast %18 : vector<1x128xf32> to vector<32x128xf32>
    %23 = arith.mulf %2, %22 : vector<32x128xf32>
    %24 = vector.broadcast %21 : vector<1x128xf32> to vector<32x128xf32>
    %25 = arith.addf %23, %24 : vector<32x128xf32>
    %cst_11 = arith.constant 0.000000e+00 : f32
    %26 = vector.broadcast %cst_11 : f32 to vector<32x128xf32>
    %27 = arith.maximumf %25, %26 : vector<32x128xf32>
    %28 = arith.truncf %27 : vector<32x128xf32> to vector<32x128xbf16>
    %c0_12 = arith.constant 0 : index
    %c0_13 = arith.constant 0 : index
    %29 = vector.load %arg4[%c0_12, %c0_13] : memref<32x128xbf16, #tpu.memory_space<vmem>>, vector<32x128xbf16>
    tpu.vector_store %arg4[%c0_12, %c0_13], %28 {strides = array<i32>} : memref<32x128xbf16, #tpu.memory_space<vmem>>, vector<32x128xbf16>,
    return
  }
  func.func @transform_0(%arg0: i32) -> (i32, i32) {
    %c0_i32 = arith.constant 0 : i32
    %c0_i32_0 = arith.constant 0 : i32
    return %arg0, %c0_i32 : i32, i32
  }
  func.func @transform_1(%arg0: i32) -> (i32, i32) {
    %c0_i32 = arith.constant 0 : i32
    %c0_i32_0 = arith.constant 0 : i32
    %c0_i32_1 = arith.constant 0 : i32
    return %c0_i32, %c0_i32_0 : i32, i32
  }
  func.func @transform_2(%arg0: i32) -> (i32, i32) {
    %c0_i32 = arith.constant 0 : i32
    %c0_i32_0 = arith.constant 0 : i32
    %c0_i32_1 = arith.constant 0 : i32
    return %c0_i32, %c0_i32_0 : i32, i32
  }
  func.func @transform_3(%arg0: i32) -> (i32, i32) {
    %c0_i32 = arith.constant 0 : i32
    %c0_i32_0 = arith.constant 0 : i32
    return %arg0, %c0_i32 : i32, i32
  }
}

module attributes {stable_mosaic.version = 11 : i64} {
  func.func @_conv_bias_act_kernel(%arg0: i32, %arg1: memref<16x1024xbf16, #tpu.memory_space<vmem>>, %arg2: memref<1024x128xbf16, #tpu.memory_space<vmem>>, %arg3: memref<1x128xf32, #tpu.memory_space<vmem>>, %arg4: memref<16x128xf32, #tpu.memory_space<vmem>>) attributes {dimension_semantics = [#tpu.dimension_semantics<parallel>], iteration_bounds = array<i64: 1>, scalar_prefetch = 0 : i64, scratch_operands = 0 : i64, tpu.core_type = #tpu.core_type<tc>, window_params = [{transform_indices = @transform_0, window_bounds = array<i64: 16, 1024>}, {pipeline_mode = #tpu.pipeline_mode<synchronous>, transform_indices = @transform_1, window_bounds = array<i64: 1024, 128>}, {pipeline_mode = #tpu.pipeline_mode<synchronous>, transform_indices = @transform_2, window_bounds = array<i64: 1, 128>}, {transform_indices = @transform_3, window_bounds = array<i64: 16, 128>}]} {
    %c0 = arith.constant 0 : index
    %c0_0 = arith.constant 0 : index
    %0 = vector.load %arg1[%c0, %c0_0] : memref<16x1024xbf16, #tpu.memory_space<vmem>>, vector<16x1024xbf16>
    %c0_1 = arith.constant 0 : index
    %c0_2 = arith.constant 0 : index
    %1 = vector.load %arg2[%c0_1, %c0_2] : memref<1024x128xbf16, #tpu.memory_space<vmem>>, vector<1024x128xbf16>
    %cst = arith.constant dense<0.000000e+00> : vector<16x128xf32>
    %2 = tpu.matmul %0, %1, %cst {dimension_numbers = #tpu.dot_dimension_numbers<[1], [0], [0], [1], [0, 0, 1, 1], [], []>} : vector<16x1024xbf16>, vector<1024x128xbf16>, vector<16x128xf32> -> vector<16x128xf32>
    %c0_3 = arith.constant 0 : index
    %c0_4 = arith.constant 0 : index
    %3 = vector.load %arg3[%c0_3, %c0_4] : memref<1x128xf32, #tpu.memory_space<vmem>>, vector<1x128xf32>
    %4 = vector.broadcast %3 : vector<1x128xf32> to vector<16x128xf32>
    %5 = arith.addf %2, %4 : vector<16x128xf32>
    %c0_5 = arith.constant 0 : index
    %c0_6 = arith.constant 0 : index
    %6 = vector.load %arg4[%c0_5, %c0_6] : memref<16x128xf32, #tpu.memory_space<vmem>>, vector<16x128xf32>
    tpu.vector_store %arg4[%c0_5, %c0_6], %5 {strides = array<i32>} : memref<16x128xf32, #tpu.memory_space<vmem>>, vector<16x128xf32>,
    return
  }
  func.func @transform_0(%arg0: i32) -> (i32, i32) {
    %c0_i32 = arith.constant 0 : i32
    %c0_i32_0 = arith.constant 0 : i32
    return %arg0, %c0_i32 : i32, i32
  }
  func.func @transform_1(%arg0: i32) -> (i32, i32) {
    %c0_i32 = arith.constant 0 : i32
    %c0_i32_0 = arith.constant 0 : i32
    %c0_i32_1 = arith.constant 0 : i32
    return %c0_i32, %c0_i32_0 : i32, i32
  }
  func.func @transform_2(%arg0: i32) -> (i32, i32) {
    %c0_i32 = arith.constant 0 : i32
    %c0_i32_0 = arith.constant 0 : i32
    %c0_i32_1 = arith.constant 0 : i32
    return %c0_i32, %c0_i32_0 : i32, i32
  }
  func.func @transform_3(%arg0: i32) -> (i32, i32) {
    %c0_i32 = arith.constant 0 : i32
    %c0_i32_0 = arith.constant 0 : i32
    return %arg0, %c0_i32 : i32, i32
  }
}

</mosaic_0001>

<llo_original>
// kernel: discriminator_forward.5
$region0: #{discriminator_forward.5}
  #allocation0 [shape = 'u32[]', space=smem, size = 0x4, offset = 0x4, fixed_abs, tag = 'smem constant byte address 0x4 - core index']
  #allocation1 [shape = 'u32[144,128]{1,0:T(1,128)}', space=vmem, size = 0x12000, scoped, tag = 'internal scratch']
  %s0 = inlined_call_operand.vmem [shape: bf16[512,128], index: 0, kind: input, shape index: {}]
  %s1 = inlined_call_operand.vmem [shape: bf16[128,128], index: 1, kind: input, shape index: {}]
  %s2 = inlined_call_operand.vmem [shape: f32[1,128], index: 2, kind: input, shape index: {}]
  %s3 = inlined_call_operand.vmem [shape: bf16[512,128], index: 3, kind: output, shape index: {}]
  %s4 = sld [smem:[#allocation0]]
  $region45: #{discriminator_forward.5} parent=0
    _
  %s6 = ssub.s32 1, %s4
  %s7 = scalar_select 0, %s6, %s4
  loop: start=0, step=1, limit=4
  $region2: #{discriminator_forward.5} parent=0 // loop_pre_header
    _
  $region3: #{discriminator_forward.5} parent=0 // loop_header
    %s9 = sphi 0, %s13
    %p10 = scmp.ge.s32.totalorder %s9, 4
    %s19 = sphi 0, %s21
    %s22 = sphi 0, %s19
    %s23 = sphi 0, %s22
    %s39 = sphi 0, %s23
    %s43 = sphi 0, %s43
    %s45 = sphi 0, %s43
    %s46 = sphi 0, %s45
    %s60 = sphi 0, %s46
    %s64 = sphi 0, %s64
    %s66 = sphi 0, %s64
    %s67 = sphi 0, %s66
    %s81 = sphi 0, %s67
    %s87 = sphi 0, %s89
    %s90 = sphi 0, %s87
    %s91 = sphi 0, %s90
    %s107 = sphi 0, %s91
  $region4: #{discriminator_forward.5} parent=0 // loop_header_branch
    %12 = sbr.rel (%p10) target = $region8
  $region5: #{discriminator_forward.5} parent=0 // loop_body
    %s14 = ssub.s32 %s9, 1
    %s15 = ssub.s32 %s9, 2
    %s16 = sadd.s32 %s9, 1
    %s17 = ssub.s32 %s9, %s16
    %p18 = scmp.eq.s32.totalorder %s17, 0
    %s20 = sadd.s32 %s19, 1
    %s21 = scalar_select %p18, %s19, %s20
    %p24 = pneg %p18
    %p25 = scmp.eq.s32.totalorder %s9, 1
    %p26 = por %p24, %p25
    %p27 = scmp.ne.s32.totalorder %s19, %s22
    %p28 = scmp.eq.s32.totalorder %s9, 0
    %p29 = por %p27, %p28
    %p30 = scmp.ne.s32.totalorder %s19, %s22
    %p31 = scmp.eq.s32.totalorder %s14, 1
    %p32 = por %p30, %p31
    %p33 = scmp.ne.s32.totalorder %s22, %s23
    %p34 = scmp.eq.s32.totalorder %s14, 0
    %p35 = por %p33, %p34
    %p36 = scmp.ne.s32.totalorder %s22, %s23
    %p37 = scmp.eq.s32.totalorder %s15, 1
    %p38 = por %p36, %p37
    %p40 = scmp.ne.s32.totalorder %s23, %s39
    %p41 = scmp.eq.s32.totalorder %s15, 0
    %p42 = por %p40, %p41
    %s44 = sadd.s32 %s43, 1
    %p47 = scmp.eq.s32.totalorder %s9, 1
    %p48 = scmp.ne.s32.totalorder %s43, %s45
    %p49 = scmp.eq.s32.totalorder %s9, 0
    %p50 = por %p48, %p49
    %p51 = scmp.ne.s32.totalorder %s43, %s45
    %p52 = scmp.eq.s32.totalorder %s14, 1
    %p53 = por %p51, %p52
    %p54 = scmp.ne.s32.totalorder %s45, %s46
    %p55 = scmp.eq.s32.totalorder %s14, 0
    %p56 = por %p54, %p55
    %p57 = scmp.ne.s32.totalorder %s45, %s46
    %p58 = scmp.eq.s32.totalorder %s15, 1
    %p59 = por %p57, %p58
    %p61 = scmp.ne.s32.totalorder %s46, %s60
    %p62 = scmp.eq.s32.totalorder %s15, 0
    %p63 = por %p61, %p62
    %s65 = sadd.s32 %s64, 1
    %p68 = scmp.eq.s32.totalorder %s9, 1
    %p69 = scmp.ne.s32.totalorder %s64, %s66
    %p70 = scmp.eq.s32.totalorder %s9, 0
    %p71 = por %p69, %p70
    %p72 = scmp.ne.s32.totalorder %s64, %s66
    %p73 = scmp.eq.s32.totalorder %s14, 1
    %p74 = por %p72, %p73
    %p75 = scmp.ne.s32.totalorder %s66, %s67
    %p76 = scmp.eq.s32.totalorder %s14, 0
    %p77 = por %p75, %p76
    %p78 = scmp.ne.s32.totalorder %s66, %s67
    %p79 = scmp.eq.s32.totalorder %s15, 1
    %p80 = por %p78, %p79
    %p82 = scmp.ne.s32.totalorder %s67, %s81
    %p83 = scmp.eq.s32.totalorder %s15, 0
    %p84 = por %p82, %p83
    %s85 = ssub.s32 %s9, %s16
    %p86 = scmp.eq.s32.totalorder %s85, 0
    %s88 = sadd.s32 %s87, 1
    %s89 = scalar_select %p86, %s87, %s88
    %p92 = pneg %p86
    %p93 = scmp.eq.s32.totalorder %s9, 1
    %p94 = por %p92, %p93
    %p95 = scmp.ne.s32.totalorder %s87, %s90
    %p96 = scmp.eq.s32.totalorder %s9, 0
    %p97 = por %p95, %p96
    %p98 = scmp.ne.s32.totalorder %s87, %s90
    %p99 = scmp.eq.s32.totalorder %s14, 1
    %p100 = por %p98, %p99
    %p101 = scmp.ne.s32.totalorder %s90, %s91
    %p102 = scmp.eq.s32.totalorder %s14, 0
    %p103 = por %p101, %p102
    %p104 = scmp.ne.s32.totalorder %s90, %s91
    %p105 = scmp.eq.s32.totalorder %s15, 1
    %p106 = por %p104, %p105
    %p108 = scmp.ne.s32.totalorder %s91, %s107
    %p109 = scmp.eq.s32.totalorder %s15, 0
    %p110 = por %p108, %p109
    %p111 = scmp.le.s32.totalorder 1, %s9
    %p112 = scmp.lt.s32.totalorder %s9, 3
    %p113 = pnand %p111, %p112
    %p114 = pneg %p113
    // Predicated region
    $region9: #{discriminator_forward.5} parent=5 // pred_check
      _
    $region10: #{discriminator_forward.5} parent=5 // pred_check_branch
      %116 = sbr.rel (%p113) target = $region12
    $region11: #{discriminator_forward.5} parent=5 // pred_region
      %s117 = ssub.s32 %s9, 1
      // Predicated region
      $region13: #{discriminator_forward.5} parent=11 // pred_check
        %p118 = pneg %p56
      $region14: #{discriminator_forward.5} parent=11 // pred_check_branch
        %120 = sbr.rel (%p118) target = $region16
      $region15: #{discriminator_forward.5} parent=11 // pred_region
        _
      $region16: #{discriminator_forward.5} parent=11 // pred_fallthru
        _
      // Predicated region
      $region17: #{discriminator_forward.5} parent=11 // pred_check
        %p121 = pneg %p77
      $region18: #{discriminator_forward.5} parent=11 // pred_check_branch
        %123 = sbr.rel (%p121) target = $region20
      $region19: #{discriminator_forward.5} parent=11 // pred_region
        _
      $region20: #{discriminator_forward.5} parent=11 // pred_fallthru
        _
    $region12: #{discriminator_forward.5} parent=5 // pred_fallthru
      _
    %p124 = scmp.lt.s32.totalorder %s9, 2
    // Predicated region
    $region21: #{discriminator_forward.5} parent=5 // pred_check
      %p125 = pneg %p124
    $region22: #{discriminator_forward.5} parent=5 // pred_check_branch
      %127 = sbr.rel (%p125) target = $region24
    $region23: #{discriminator_forward.5} parent=5 // pred_region
      // Predicated region
      $region25: #{discriminator_forward.5} parent=23 // pred_check
        %p128 = pneg %p29
      $region26: #{discriminator_forward.5} parent=23 // pred_check_branch
        %130 = sbr.rel (%p128) target = $region28
      $region27: #{discriminator_forward.5} parent=23 // pred_region
        %s131 = smul.u32 32, %s9
        %p132 = scmp.lt.s32.totalorder %s131, 63
        %s133 = scalar_select %p132, %s131, 63
        %s134 = smul.addr %s133, 4
        %s135 = scalar_lea.vmem %s0, %s134
        %s136 = smul.u32 32, %s9
      $region28: #{discriminator_forward.5} parent=23 // pred_fallthru
        _
    $region24: #{discriminator_forward.5} parent=5 // pred_fallthru
      _
    %p137 = scmp.le.s32.totalorder 1, %s9
    %p138 = scmp.lt.s32.totalorder %s9, 3
    %p139 = pnand %p137, %p138
    %p140 = pneg %p139
    // Predicated region
    $region29: #{discriminator_forward.5} parent=5 // pred_check
      _
    $region30: #{discriminator_forward.5} parent=5 // pred_check_branch
      %142 = sbr.rel (%p139) target = $region32
    $region31: #{discriminator_forward.5} parent=5 // pred_region
      %s143 = ssub.s32 %s9, 1
      %s144 = smul.u32 32, %s14
      %p145 = scmp.lt.s32.totalorder %s144, 63
      %s146 = scalar_select %p145, %s144, 63
      %s147 = smul.addr %s146, 4
      %s148 = scalar_lea.vmem %s0, %s147
      %p149 = pneg %p35
      %p150 = pneg %p32
      %p151 = pneg %p56
      %p152 = pneg %p53
      %p153 = pneg %p77
      %p154 = pneg %p74
      %p155 = pneg %p103
      %p156 = pneg %p100
      %s157 = smul.u32 32, %s14
      %p158 = scmp.lt.s32.totalorder %s157, 63
      %s159 = scalar_select %p158, %s157, 63
      %s160 = smul.addr %s159, 4
      %s161 = scalar_lea.vmem %s3, %s160
      %s162 = smul.u32 32, %s14
      %p163 = scmp.lt.s32.totalorder %s162, 63
      %s164 = scalar_select %p163, %s162, 63
      %s165 = smul.addr %s164, 4
      %s166 = scalar_lea.vmem %s0, %s165
      %s167 = smul.u32 32, %s14
      %s168 = smul.u32 32, %s14
      %p169 = scmp.lt.s32.totalorder %s168, 63
      %s170 = scalar_select %p169, %s168, 63
      %s171 = smul.addr %s170, 4
      %s172 = scalar_lea.vmem %s3, %s171
      %s173 = smul.u32 32, %s14
      %v175 = vld [vmem:[%s166] sm:$0xf]
      %v176 = vld [vmem:[%s166 + $0x4] sm:$0xf]
      %v177 = vld [vmem:[%s166 + $0x8] sm:$0xf]
      %v178 = vld [vmem:[%s166 + $0xc] sm:$0xf]
      %v179 = vld [vmem:[%s166 + $0x10] sm:$0xf]
      %v180 = vld [vmem:[%s166 + $0x14] sm:$0xf]
      %v181 = vld [vmem:[%s166 + $0x18] sm:$0xf]
      %v182 = vld [vmem:[%s166 + $0x1c] sm:$0xf]
      %v183 = vld [vmem:[%s166 + $0x20] sm:$0xf]
      %v184 = vld [vmem:[%s166 + $0x24] sm:$0xf]
      %v185 = vld [vmem:[%s166 + $0x28] sm:$0xf]
      %v186 = vld [vmem:[%s166 + $0x2c] sm:$0xf]
      %v187 = vld [vmem:[%s166 + $0x30] sm:$0xf]
      %v188 = vld [vmem:[%s166 + $0x34] sm:$0xf]
      %v189 = vld [vmem:[%s166 + $0x38] sm:$0xf]
      %v190 = vld [vmem:[%s166 + $0x3c] sm:$0xf]
      %v191 = vld [vmem:[%s166 + $0x40] sm:$0xf]
      %v192 = vld [vmem:[%s166 + $0x44] sm:$0xf]
      %v193 = vld [vmem:[%s166 + $0x48] sm:$0xf]
      %v194 = vld [vmem:[%s166 + $0x4c] sm:$0xf]
      %v195 = vld [vmem:[%s166 + $0x50] sm:$0xf]
      %v196 = vld [vmem:[%s166 + $0x54] sm:$0xf]
      %v197 = vld [vmem:[%s166 + $0x58] sm:$0xf]
      %v198 = vld [vmem:[%s166 + $0x5c] sm:$0xf]
      %v199 = vld [vmem:[%s166 + $0x60] sm:$0xf]
      %v200 = vld [vmem:[%s166 + $0x64] sm:$0xf]
      %v201 = vld [vmem:[%s166 + $0x68] sm:$0xf]
      %v202 = vld [vmem:[%s166 + $0x6c] sm:$0xf]
      %v203 = vld [vmem:[%s166 + $0x70] sm:$0xf]
      %v204 = vld [vmem:[%s166 + $0x74] sm:$0xf]
      %v205 = vld [vmem:[%s166 + $0x78] sm:$0xf]
      %v206 = vld [vmem:[%s166 + $0x7c] sm:$0xf]
      %v207 = vld [vmem:[%s1] sm:$0xf]
      %v208 = vld [vmem:[%s1 + $0x4] sm:$0xf]
      %v209 = vld [vmem:[%s1 + $0x8] sm:$0xf]
      %v210 = vld [vmem:[%s1 + $0xc] sm:$0xf]
      %v211 = vld [vmem:[%s1 + $0x10] sm:$0xf]
      %v212 = vld [vmem:[%s1 + $0x14] sm:$0xf]
      %v213 = vld [vmem:[%s1 + $0x18] sm:$0xf]
      %v214 = vld [vmem:[%s1 + $0x1c] sm:$0xf]
      %v215 = vld [vmem:[%s1 + $0x20] sm:$0xf]
      %v216 = vld [vmem:[%s1 + $0x24] sm:$0xf]
      %v217 = vld [vmem:[%s1 + $0x28] sm:$0xf]
      %v218 = vld [vmem:[%s1 + $0x2c] sm:$0xf]
      %v219 = vld [vmem:[%s1 + $0x30] sm:$0xf]
      %v220 = vld [vmem:[%s1 + $0x34] sm:$0xf]
      %v221 = vld [vmem:[%s1 + $0x38] sm:$0xf]
      %v222 = vld [vmem:[%s1 + $0x3c] sm:$0xf]
      %v223 = vld [vmem:[%s2] sm:$0x1]
      %v225 = vlaneseq
      %v226 = vshrl.u32 %v225, 7
      %v227 = vsub.s32 0, %v226
      %v228 = vrot.slane %v223, %v227
      %v262 = vunpack.c.l.b16 %v175
      %v263 = vunpack.c.l.b16 %v176
      %v264 = vunpack.c.l.b16 %v177
      %v265 = vunpack.c.l.b16 %v178
      %v266 = vunpack.c.l.b16 %v179
      %v267 = vunpack.c.l.b16 %v180
      %v268 = vunpack.c.l.b16 %v181
      %v269 = vunpack.c.l.b16 %v182
      %v270 = vunpack.c.l.b16 %v183
      %v271 = vunpack.c.l.b16 %v184
      %v272 = vunpack.c.l.b16 %v185
      %v273 = vunpack.c.l.b16 %v186
      %v274 = vunpack.c.l.b16 %v187
      %v275 = vunpack.c.l.b16 %v188
      %v276 = vunpack.c.l.b16 %v189
      %v277 = vunpack.c.l.b16 %v190
      %v278 = vunpack.c.l.b16 %v191
      %v279 = vunpack.c.l.b16 %v192
      %v280 = vunpack.c.l.b16 %v193
      %v281 = vunpack.c.l.b16 %v194
      %v282 = vunpack.c.l.b16 %v195
      %v283 = vunpack.c.l.b16 %v196
      %v284 = vunpack.c.l.b16 %v197
      %v285 = vunpack.c.l.b16 %v198
      %v286 = vunpack.c.l.b16 %v199
      %v287 = vunpack.c.l.b16 %v200
      %v288 = vunpack.c.l.b16 %v201
      %v289 = vunpack.c.l.b16 %v202
      %v290 = vunpack.c.l.b16 %v203
      %v291 = vunpack.c.l.b16 %v204
      %v292 = vunpack.c.l.b16 %v205
      %v293 = vunpack.c.l.b16 %v206
      %v294 = vpack.c.b16 %v263, %v262
      %v295 = vpack.c.b16 %v265, %v264
      %v296 = vpack.c.b16 %v267, %v266
      %v297 = vpack.c.b16 %v269, %v268
      %v298 = vpack.c.b16 %v271, %v270
      %v299 = vpack.c.b16 %v273, %v272
      %v300 = vpack.c.b16 %v275, %v274
      %v301 = vpack.c.b16 %v277, %v276
      %v302 = vpack.c.b16 %v279, %v278
      %v303 = vpack.c.b16 %v281, %v280
      %v304 = vpack.c.b16 %v283, %v282
      %v305 = vpack.c.b16 %v285, %v284
      %v306 = vpack.c.b16 %v287, %v286
      %v307 = vpack.c.b16 %v289, %v288
      %v308 = vpack.c.b16 %v291, %v290
      %v309 = vpack.c.b16 %v293, %v292
      %v342 = vunpack.c.l.b16 %v207
      %v343 = vunpack.c.l.b16 %v208
      %v344 = vunpack.c.l.b16 %v209
      %v345 = vunpack.c.l.b16 %v210
      %v346 = vunpack.c.l.b16 %v211
      %v347 = vunpack.c.l.b16 %v212
      %v348 = vunpack.c.l.b16 %v213
      %v349 = vunpack.c.l.b16 %v214
      %v350 = vunpack.c.l.b16 %v215
      %v351 = vunpack.c.l.b16 %v216
      %v352 = vunpack.c.l.b16 %v217
      %v353 = vunpack.c.l.b16 %v218
      %v354 = vunpack.c.l.b16 %v219
      %v355 = vunpack.c.l.b16 %v220
      %v356 = vunpack.c.l.b16 %v221
      %v357 = vunpack.c.l.b16 %v222
      %v358 = vpack.c.b16 %v343, %v342
      %v359 = vpack.c.b16 %v345, %v344
      %v360 = vpack.c.b16 %v347, %v346
      %v361 = vpack.c.b16 %v349, %v348
      %v362 = vpack.c.b16 %v351, %v350
      %v363 = vpack.c.b16 %v353, %v352
      %v364 = vpack.c.b16 %v355, %v354
      %v365 = vpack.c.b16 %v357, %v356
      %374 = vmatprep.subr.bf16.mxu0 0
      %375 = vmatpush1.bf16.msra.mxu0 %v358
      %376 = vmatprep.subr.bf16.mxu0 0
      %377 = vmatpush1.bf16.msra.mxu0 %v359
      %378 = vmatprep.subr.bf16.mxu0 0
      %379 = vmatpush1.bf16.msra.mxu0 %v360
      %380 = vmatprep.subr.bf16.mxu0 0
      %381 = vmatpush1.bf16.msra.mxu0 %v361
      %382 = vmatprep.subr.bf16.mxu0 0
      %383 = vmatpush1.bf16.msra.mxu0 %v362
      %384 = vmatprep.subr.bf16.mxu0 0
      %385 = vmatpush1.bf16.msra.mxu0 %v363
      %386 = vmatprep.subr.bf16.mxu0 0
      %387 = vmatpush1.bf16.msra.mxu0 %v364
      %388 = vmatprep.subr.bf16.mxu0 0
      %389 = vmatpush1.bf16.msra.mxu0 %v365
      %390 = vmatprep.subr.bf16.mxu0 0
      %391 = vmatpush1.bf16.msra.mxu0 0
      %392 = vmatprep.subr.bf16.mxu0 0
      %393 = vmatpush1.bf16.msra.mxu0 0
      %394 = vmatprep.subr.bf16.mxu0 0
      %395 = vmatpush1.bf16.msra.mxu0 0
      %396 = vmatprep.subr.bf16.mxu0 0
      %397 = vmatpush1.bf16.msra.mxu0 0
      %398 = vmatprep.subr.bf16.mxu0 0
      %399 = vmatpush1.bf16.msra.mxu0 0
      %400 = vmatprep.subr.bf16.mxu0 0
      %401 = vmatpush1.bf16.msra.mxu0 0
      %402 = vmatprep.subr.bf16.mxu0 0
      %403 = vmatpush1.bf16.msra.mxu0 0
      %404 = vmatprep.subr.bf16.mxu0 0
      %405 = vmatpush1.bf16.msra.mxu0 0
      %406 = vmatprep.mubr.bf16.mxu0 0
      %407 = vmatmul.mubr.bf16.gmra.mrb[0].mxu0 %v294
      %v408 = vpop.f32.mrb[0].mxu0
      %v409 = vadd.f32 %v228, %v408
      %v410 = vpop.f32.mrb[0].mxu0
      %v411 = vpop.f32.mrb[0].mxu0
      %v412 = vadd.f32 %v228, %v411
      %v413 = vpop.f32.mrb[0].mxu0
      %414 = vmatprep.mubr.bf16.mxu0 0
      %415 = vmatmul.mubr.bf16.gmra.mrb[0].mxu0 %v295
      %v416 = vpop.f32.mrb[0].mxu0
      %v417 = vadd.f32 %v228, %v416
      %v418 = vpop.f32.mrb[0].mxu0
      %v419 = vpop.f32.mrb[0].mxu0
      %v420 = vadd.f32 %v228, %v419
      %v421 = vpop.f32.mrb[0].mxu0
      %422 = vmatprep.mubr.bf16.mxu0 0
      %423 = vmatmul.mubr.bf16.gmra.mrb[0].mxu0 %v296
      %v424 = vpop.f32.mrb[0].mxu0
      %v425 = vadd.f32 %v228, %v424
      %v426 = vpop.f32.mrb[0].mxu0
      %v427 = vpop.f32.mrb[0].mxu0
      %v428 = vadd.f32 %v228, %v427
      %v429 = vpop.f32.mrb[0].mxu0
      %430 = vmatprep.mubr.bf16.mxu0 0
      %431 = vmatmul.mubr.bf16.gmra.mrb[0].mxu0 %v297
      %v432 = vpop.f32.mrb[0].mxu0
      %v433 = vadd.f32 %v228, %v432
      %v434 = vpop.f32.mrb[0].mxu0
      %v435 = vpop.f32.mrb[0].mxu0
      %v436 = vadd.f32 %v228, %v435
      %v437 = vpop.f32.mrb[0].mxu0
      %438 = vmatprep.mubr.bf16.mxu0 0
      %439 = vmatmul.mubr.bf16.gmra.mrb[0].mxu0 %v298
      %v440 = vpop.f32.mrb[0].mxu0
      %v441 = vadd.f32 %v228, %v440
      %v442 = vpop.f32.mrb[0].mxu0
      %v443 = vpop.f32.mrb[0].mxu0
      %v444 = vadd.f32 %v228, %v443
      %v445 = vpop.f32.mrb[0].mxu0
      %446 = vmatprep.mubr.bf16.mxu0 0
      %447 = vmatmul.mubr.bf16.gmra.mrb[0].mxu0 %v299
      %v448 = vpop.f32.mrb[0].mxu0
      %v449 = vadd.f32 %v228, %v448
      %v450 = vpop.f32.mrb[0].mxu0
      %v451 = vpop.f32.mrb[0].mxu0
      %v452 = vadd.f32 %v228, %v451
      %v453 = vpop.f32.mrb[0].mxu0
      %454 = vmatprep.mubr.bf16.mxu0 0
      %455 = vmatmul.mubr.bf16.gmra.mrb[0].mxu0 %v300
      %v456 = vpop.f32.mrb[0].mxu0
      %v457 = vadd.f32 %v228, %v456
      %v458 = vpop.f32.mrb[0].mxu0
      %v459 = vpop.f32.mrb[0].mxu0
      %v460 = vadd.f32 %v228, %v459
      %v461 = vpop.f32.mrb[0].mxu0
      %462 = vmatprep.mubr.bf16.mxu0 0
      %463 = vmatmul.mubr.bf16.gmra.mrb[0].mxu0 %v301
      %v464 = vpop.f32.mrb[0].mxu0
      %v465 = vadd.f32 %v228, %v464
      %v466 = vpop.f32.mrb[0].mxu0
      %v467 = vpop.f32.mrb[0].mxu0
      %v468 = vadd.f32 %v228, %v467
      %v469 = vpop.f32.mrb[0].mxu0
      %470 = vmatprep.mubr.bf16.mxu0 0
      %471 = vmatmul.mubr.bf16.gmra.mrb[0].mxu0 %v302
      %v472 = vpop.f32.mrb[0].mxu0
      %v473 = vadd.f32 %v228, %v472
      %v474 = vpop.f32.mrb[0].mxu0
      %v475 = vpop.f32.mrb[0].mxu0
      %v476 = vadd.f32 %v228, %v475
      %v477 = vpop.f32.mrb[0].mxu0
      %478 = vmatprep.mubr.bf16.mxu0 0
      %479 = vmatmul.mubr.bf16.gmra.mrb[0].mxu0 %v303
      %v480 = vpop.f32.mrb[0].mxu0
      %v481 = vadd.f32 %v228, %v480
      %v482 = vpop.f32.mrb[0].mxu0
      %v483 = vpop.f32.mrb[0].mxu0
      %v484 = vadd.f32 %v228, %v483
      %v485 = vpop.f32.mrb[0].mxu0
      %486 = vmatprep.mubr.bf16.mxu0 0
      %487 = vmatmul.mubr.bf16.gmra.mrb[0].mxu0 %v304
      %v488 = vpop.f32.mrb[0].mxu0
      %v489 = vadd.f32 %v228, %v488
      %v490 = vpop.f32.mrb[0].mxu0
      %v491 = vpop.f32.mrb[0].mxu0
      %v492 = vadd.f32 %v228, %v491
      %v493 = vpop.f32.mrb[0].mxu0
      %494 = vmatprep.mubr.bf16.mxu0 0
      %495 = vmatmul.mubr.bf16.gmra.mrb[0].mxu0 %v305
      %v496 = vpop.f32.mrb[0].mxu0
      %v497 = vadd.f32 %v228, %v496
      %v498 = vpop.f32.mrb[0].mxu0
      %v499 = vpop.f32.mrb[0].mxu0
      %v500 = vadd.f32 %v228, %v499
      %v501 = vpop.f32.mrb[0].mxu0
      %502 = vmatprep.mubr.bf16.mxu0 0
      %503 = vmatmul.mubr.bf16.gmra.mrb[0].mxu0 %v306
      %v504 = vpop.f32.mrb[0].mxu0
      %v505 = vadd.f32 %v228, %v504
      %v506 = vpop.f32.mrb[0].mxu0
      %v507 = vpop.f32.mrb[0].mxu0
      %v508 = vadd.f32 %v228, %v507
      %v509 = vpop.f32.mrb[0].mxu0
      %510 = vmatprep.mubr.bf16.mxu0 0
      %511 = vmatmul.mubr.bf16.gmra.mrb[0].mxu0 %v307
      %v512 = vpop.f32.mrb[0].mxu0
      %v513 = vadd.f32 %v228, %v512
      %v514 = vpop.f32.mrb[0].mxu0
      %v515 = vpop.f32.mrb[0].mxu0
      %v516 = vadd.f32 %v228, %v515
      %v517 = vpop.f32.mrb[0].mxu0
      %518 = vmatprep.mubr.bf16.mxu0 0
      %519 = vmatmul.mubr.bf16.gmra.mrb[0].mxu0 %v308
      %v520 = vpop.f32.mrb[0].mxu0
      %v521 = vadd.f32 %v228, %v520
      %v522 = vpop.f32.mrb[0].mxu0
      %v523 = vpop.f32.mrb[0].mxu0
      %v524 = vadd.f32 %v228, %v523
      %v525 = vpop.f32.mrb[0].mxu0
      %526 = vmatprep.mubr.bf16.mxu0 0
      %527 = vmatmul.mubr.bf16.gmra.mrb[0].mxu0 %v309
      %v528 = vpop.f32.mrb[0].mxu0
      %v529 = vadd.f32 %v228, %v528
      %v530 = vpop.f32.mrb[0].mxu0
      %v531 = vpop.f32.mrb[0].mxu0
      %v532 = vadd.f32 %v228, %v531
      %v533 = vpop.f32.mrb[0].mxu0
      %534 = vdwg.mxu0
      %vm535 = vcmp.ge.f32.partialorder %v409, 0.0
      %vm536 = vcmp.ge.f32.partialorder %v412, 0.0
      %vm537 = vcmp.ge.f32.partialorder %v417, 0.0
      %vm538 = vcmp.ge.f32.partialorder %v420, 0.0
      %vm539 = vcmp.ge.f32.partialorder %v425, 0.0
      %vm540 = vcmp.ge.f32.partialorder %v428, 0.0
      %vm541 = vcmp.ge.f32.partialorder %v433, 0.0
      %vm542 = vcmp.ge.f32.partialorder %v436, 0.0
      %vm543 = vcmp.ge.f32.partialorder %v441, 0.0
      %vm544 = vcmp.ge.f32.partialorder %v444, 0.0
      %vm545 = vcmp.ge.f32.partialorder %v449, 0.0
      %vm546 = vcmp.ge.f32.partialorder %v452, 0.0
      %vm547 = vcmp.ge.f32.partialorder %v457, 0.0
      %vm548 = vcmp.ge.f32.partialorder %v460, 0.0
      %vm549 = vcmp.ge.f32.partialorder %v465, 0.0
      %vm550 = vcmp.ge.f32.partialorder %v468, 0.0
      %vm551 = vcmp.ge.f32.partialorder %v473, 0.0
      %vm552 = vcmp.ge.f32.partialorder %v476, 0.0
      %vm553 = vcmp.ge.f32.partialorder %v481, 0.0
      %vm554 = vcmp.ge.f32.partialorder %v484, 0.0
      %vm555 = vcmp.ge.f32.partialorder %v489, 0.0
      %vm556 = vcmp.ge.f32.partialorder %v492, 0.0
      %vm557 = vcmp.ge.f32.partialorder %v497, 0.0
      %vm558 = vcmp.ge.f32.partialorder %v500, 0.0
      %vm559 = vcmp.ge.f32.partialorder %v505, 0.0
      %vm560 = vcmp.ge.f32.partialorder %v508, 0.0
      %vm561 = vcmp.ge.f32.partialorder %v513, 0.0
      %vm562 = vcmp.ge.f32.partialorder %v516, 0.0
      %vm563 = vcmp.ge.f32.partialorder %v521, 0.0
      %vm564 = vcmp.ge.f32.partialorder %v524, 0.0
      %vm565 = vcmp.ge.f32.partialorder %v529, 0.0
      %vm566 = vcmp.ge.f32.partialorder %v532, 0.0
      %v567 = vmul.f32 %v409, 0.01
      %v568 = vmul.f32 %v412, 0.01
      %v569 = vmul.f32 %v417, 0.01
      %v570 = vmul.f32 %v420, 0.01
      %v571 = vmul.f32 %v425, 0.01
      %v572 = vmul.f32 %v428, 0.01
      %v573 = vmul.f32 %v433, 0.01
      %v574 = vmul.f32 %v436, 0.01
      %v575 = vmul.f32 %v441, 0.01
      %v576 = vmul.f32 %v444, 0.01
      %v577 = vmul.f32 %v449, 0.01
      %v578 = vmul.f32 %v452, 0.01
      %v579 = vmul.f32 %v457, 0.01
      %v580 = vmul.f32 %v460, 0.01
      %v581 = vmul.f32 %v465, 0.01
      %v582 = vmul.f32 %v468, 0.01
      %v583 = vmul.f32 %v473, 0.01
      %v584 = vmul.f32 %v476, 0.01
      %v585 = vmul.f32 %v481, 0.01
      %v586 = vmul.f32 %v484, 0.01
      %v587 = vmul.f32 %v489, 0.01
      %v588 = vmul.f32 %v492, 0.01
      %v589 = vmul.f32 %v497, 0.01
      %v590 = vmul.f32 %v500, 0.01
      %v591 = vmul.f32 %v505, 0.01
      %v592 = vmul.f32 %v508, 0.01
      %v593 = vmul.f32 %v513, 0.01
      %v594 = vmul.f32 %v516, 0.01
      %v595 = vmul.f32 %v521, 0.01
      %v596 = vmul.f32 %v524, 0.01
      %v597 = vmul.f32 %v529, 0.01
      %v598 = vmul.f32 %v532, 0.01
      %v599 = vsel %vm535, %v409, %v567
      %v600 = vsel %vm536, %v412, %v568
      %v601 = vsel %vm537, %v417, %v569
      %v602 = vsel %vm538, %v420, %v570
      %v603 = vsel %vm539, %v425, %v571
      %v604 = vsel %vm540, %v428, %v572
      %v605 = vsel %vm541, %v433, %v573
      %v606 = vsel %vm542, %v436, %v574
      %v607 = vsel %vm543, %v441, %v575
      %v608 = vsel %vm544, %v444, %v576
      %v609 = vsel %vm545, %v449, %v577
      %v610 = vsel %vm546, %v452, %v578
      %v611 = vsel %vm547, %v457, %v579
      %v612 = vsel %vm548, %v460, %v580
      %v613 = vsel %vm549, %v465, %v581
      %v614 = vsel %vm550, %v468, %v582
      %v615 = vsel %vm551, %v473, %v583
      %v616 = vsel %vm552, %v476, %v584
      %v617 = vsel %vm553, %v481, %v585
      %v618 = vsel %vm554, %v484, %v586
      %v619 = vsel %vm555, %v489, %v587
      %v620 = vsel %vm556, %v492, %v588
      %v621 = vsel %vm557, %v497, %v589
      %v622 = vsel %vm558, %v500, %v590
      %v623 = vsel %vm559, %v505, %v591
      %v624 = vsel %vm560, %v508, %v592
      %v625 = vsel %vm561, %v513, %v593
      %v626 = vsel %vm562, %v516, %v594
      %v627 = vsel %vm563, %v521, %v595
      %v628 = vsel %vm564, %v524, %v596
      %v629 = vsel %vm565, %v529, %v597
      %v630 = vsel %vm566, %v532, %v598
      %v631 = vpack.c.bf16 %v600, %v599
      %v632 = vpack.c.bf16 %v602, %v601
      %v633 = vpack.c.bf16 %v604, %v603
      %v634 = vpack.c.bf16 %v606, %v605
      %v635 = vpack.c.bf16 %v608, %v607
      %v636 = vpack.c.bf16 %v610, %v609
      %v637 = vpack.c.bf16 %v612, %v611
      %v638 = vpack.c.bf16 %v614, %v613
      %v639 = vpack.c.bf16 %v616, %v615
      %v640 = vpack.c.bf16 %v618, %v617
      %v641 = vpack.c.bf16 %v620, %v619
      %v642 = vpack.c.bf16 %v622, %v621
      %v643 = vpack.c.bf16 %v624, %v623
      %v644 = vpack.c.bf16 %v626, %v625
      %v645 = vpack.c.bf16 %v628, %v627
      %v646 = vpack.c.bf16 %v630, %v629
      %v663 = vunpack.c.l.b16 %v631
      %v664 = vunpack.c.h.b16 %v631
      %v665 = vunpack.c.l.b16 %v632
      %v666 = vunpack.c.h.b16 %v632
      %v667 = vunpack.c.l.b16 %v633
      %v668 = vunpack.c.h.b16 %v633
      %v669 = vunpack.c.l.b16 %v634
      %v670 = vunpack.c.h.b16 %v634
      %v671 = vunpack.c.l.b16 %v635
      %v672 = vunpack.c.h.b16 %v635
      %v673 = vunpack.c.l.b16 %v636
      %v674 = vunpack.c.h.b16 %v636
      %v675 = vunpack.c.l.b16 %v637
      %v676 = vunpack.c.h.b16 %v637
      %v677 = vunpack.c.l.b16 %v638
      %v678 = vunpack.c.h.b16 %v638
      %v679 = vunpack.c.l.b16 %v639
      %v680 = vunpack.c.h.b16 %v639
      %v681 = vunpack.c.l.b16 %v640
      %v682 = vunpack.c.h.b16 %v640
      %v683 = vunpack.c.l.b16 %v641
      %v684 = vunpack.c.h.b16 %v641
      %v685 = vunpack.c.l.b16 %v642
      %v686 = vunpack.c.h.b16 %v642
      %v687 = vunpack.c.l.b16 %v643
      %v688 = vunpack.c.h.b16 %v643
      %v689 = vunpack.c.l.b16 %v644
      %v690 = vunpack.c.h.b16 %v644
      %v691 = vunpack.c.l.b16 %v645
      %v692 = vunpack.c.h.b16 %v645
      %v693 = vunpack.c.l.b16 %v646
      %v694 = vunpack.c.h.b16 %v646
      %v695 = vpack.c.b16 %v663, %v663
      %v696 = vpack.c.b16 %v664, %v664
      %v697 = vpack.c.b16 %v665, %v665
      %v698 = vpack.c.b16 %v666, %v666
      %v699 = vpack.c.b16 %v667, %v667
      %v700 = vpack.c.b16 %v668, %v668
      %v701 = vpack.c.b16 %v669, %v669
      %v702 = vpack.c.b16 %v670, %v670
      %v703 = vpack.c.b16 %v671, %v671
      %v704 = vpack.c.b16 %v672, %v672
      %v705 = vpack.c.b16 %v673, %v673
      %v706 = vpack.c.b16 %v674, %v674
      %v707 = vpack.c.b16 %v675, %v675
      %v708 = vpack.c.b16 %v676, %v676
      %v709 = vpack.c.b16 %v677, %v677
      %v710 = vpack.c.b16 %v678, %v678
      %v711 = vpack.c.b16 %v679, %v679
      %v712 = vpack.c.b16 %v680, %v680
      %v713 = vpack.c.b16 %v681, %v681
      %v714 = vpack.c.b16 %v682, %v682
      %v715 = vpack.c.b16 %v683, %v683
      %v716 = vpack.c.b16 %v684, %v684
      %v717 = vpack.c.b16 %v685, %v685
      %v718 = vpack.c.b16 %v686, %v686
      %v719 = vpack.c.b16 %v687, %v687
      %v720 = vpack.c.b16 %v688, %v688
      %v721 = vpack.c.b16 %v689, %v689
      %v722 = vpack.c.b16 %v690, %v690
      %v723 = vpack.c.b16 %v691, %v691
      %v724 = vpack.c.b16 %v692, %v692
      %v725 = vpack.c.b16 %v693, %v693
      %v726 = vpack.c.b16 %v694, %v694
      %759 = vst [vmem:[%s172] sm:$0xf] %v695
      %760 = vst [vmem:[%s172 + $0x4] sm:$0xf] %v696
      %761 = vst [vmem:[%s172 + $0x8] sm:$0xf] %v697
      %762 = vst [vmem:[%s172 + $0xc] sm:$0xf] %v698
      %763 = vst [vmem:[%s172 + $0x10] sm:$0xf] %v699
      %764 = vst [vmem:[%s172 + $0x14] sm:$0xf] %v700
      %765 = vst [vmem:[%s172 + $0x18] sm:$0xf] %v701
      %766 = vst [vmem:[%s172 + $0x1c] sm:$0xf] %v702
      %767 = vst [vmem:[%s172 + $0x20] sm:$0xf] %v703
      %768 = vst [vmem:[%s172 + $0x24] sm:$0xf] %v704
      %769 = vst [vmem:[%s172 + $0x28] sm:$0xf] %v705
      %770 = vst [vmem:[%s172 + $0x2c] sm:$0xf] %v706
      %771 = vst [vmem:[%s172 + $0x30] sm:$0xf] %v707
      %772 = vst [vmem:[%s172 + $0x34] sm:$0xf] %v708
      %773 = vst [vmem:[%s172 + $0x38] sm:$0xf] %v709
      %774 = vst [vmem:[%s172 + $0x3c] sm:$0xf] %v710
      %775 = vst [vmem:[%s172 + $0x40] sm:$0xf] %v711
      %776 = vst [vmem:[%s172 + $0x44] sm:$0xf] %v712
      %777 = vst [vmem:[%s172 + $0x48] sm:$0xf] %v713
      %778 = vst [vmem:[%s172 + $0x4c] sm:$0xf] %v714
      %779 = vst [vmem:[%s172 + $0x50] sm:$0xf] %v715
      %780 = vst [vmem:[%s172 + $0x54] sm:$0xf] %v716
      %781 = vst [vmem:[%s172 + $0x58] sm:$0xf] %v717
      %782 = vst [vmem:[%s172 + $0x5c] sm:$0xf] %v718
      %783 = vst [vmem:[%s172 + $0x60] sm:$0xf] %v719
      %784 = vst [vmem:[%s172 + $0x64] sm:$0xf] %v720
      %785 = vst [vmem:[%s172 + $0x68] sm:$0xf] %v721
      %786 = vst [vmem:[%s172 + $0x6c] sm:$0xf] %v722
      %787 = vst [vmem:[%s172 + $0x70] sm:$0xf] %v723
      %788 = vst [vmem:[%s172 + $0x74] sm:$0xf] %v724
      %789 = vst [vmem:[%s172 + $0x78] sm:$0xf] %v725
      %790 = vst [vmem:[%s172 + $0x7c] sm:$0xf] %v726
      %s791 = smul.u32 32, %s14
      %p792 = scmp.lt.s32.totalorder %s791, 63
      %s793 = scalar_select %p792, %s791, 63
      %s794 = smul.addr %s793, 4
      %s795 = scalar_lea.vmem %s3, %s794
      // Predicated region
      $region33: #{discriminator_forward.5} parent=31 // pred_check
        %p796 = pneg %p100
      $region34: #{discriminator_forward.5} parent=31 // pred_check_branch
        %798 = sbr.rel (%p796) target = $region36
      $region35: #{discriminator_forward.5} parent=31 // pred_region
        %s799 = smul.u32 32, %s14
      $region36: #{discriminator_forward.5} parent=31 // pred_fallthru
        _
    $region32: #{discriminator_forward.5} parent=5 // pred_fallthru
      _
    %p800 = scmp.le.s32.totalorder 2, %s9
    // Predicated region
    $region37: #{discriminator_forward.5} parent=5 // pred_check
      %p801 = pneg %p800
    $region38: #{discriminator_forward.5} parent=5 // pred_check_branch
      %803 = sbr.rel (%p801) target = $region40
    $region39: #{discriminator_forward.5} parent=5 // pred_region
      %s804 = ssub.s32 %s9, 2
      // Predicated region
      $region41: #{discriminator_forward.5} parent=39 // pred_check
        %p805 = pneg %p106
      $region42: #{discriminator_forward.5} parent=39 // pred_check_branch
        %807 = sbr.rel (%p805) target = $region44
      $region43: #{discriminator_forward.5} parent=39 // pred_region
        %s808 = smul.u32 32, %s15
        %p809 = scmp.lt.s32.totalorder %s808, 63
        %s810 = scalar_select %p809, %s808, 63
        %s811 = smul.addr %s810, 4
        %s812 = scalar_lea.vmem %s3, %s811
      $region44: #{discriminator_forward.5} parent=39 // pred_fallthru
        _
    $region40: #{discriminator_forward.5} parent=5 // pred_fallthru
      _
  $region6: #{discriminator_forward.5} parent=0 // loop_footer
    %s13 = sadd.s32 1, %s9
  $region7: #{discriminator_forward.5} parent=0 // loop_footer_branch
    %8 = sbr.rel target = $region3
  $region8: #{discriminator_forward.5} parent=0 // loop_exit
    _

// kernel: discriminator_forward.6
$region0: #{discriminator_forward.6}
  #allocation0 [shape = 'u32[]', space=smem, size = 0x4, offset = 0x4, fixed_abs, tag = 'smem constant byte address 0x4 - core index']
  #allocation1 [shape = 'u32[144,128]{1,0:T(1,128)}', space=vmem, size = 0x12000, scoped, tag = 'internal scratch']
  %s0 = inlined_call_operand.vmem [shape: bf16[128,128], index: 0, kind: input, shape index: {}]
  %s1 = inlined_call_operand.vmem [shape: bf16[128,128], index: 1, kind: input, shape index: {}]
  %s2 = inlined_call_operand.vmem [shape: f32[2,128], index: 2, kind: input, shape index: {}]
  %s3 = inlined_call_operand.vmem [shape: bf16[128,128], index: 3, kind: output, shape index: {}]
  %s4 = sld [smem:[#allocation0]]
  $region22: #{discriminator_forward.6} parent=0
    _
  %s6 = ssub.s32 1, %s4
  %s7 = scalar_select 0, %s6, %s4
  // Predicated region
  $region2: #{discriminator_forward.6} parent=0 // pred_check
    _
  $region3: #{discriminator_forward.6} parent=0 // pred_check_branch
    %9 = sbr.rel (0) target = $region5
  $region4: #{discriminator_forward.6} parent=0 // pred_region
    _
  $region5: #{discriminator_forward.6} parent=0 // pred_fallthru
    _
  // Predicated region
  $region6: #{discriminator_forward.6} parent=0 // pred_check
    _
  $region7: #{discriminator_forward.6} parent=0 // pred_check_branch
    %11 = sbr.rel (0) target = $region9
  $region8: #{discriminator_forward.6} parent=0 // pred_region
    _
  $region9: #{discriminator_forward.6} parent=0 // pred_fallthru
    _
  // Predicated region
  $region10: #{discriminator_forward.6} parent=0 // pred_check
    _
  $region11: #{discriminator_forward.6} parent=0 // pred_check_branch
    %13 = sbr.rel (0) target = $region13
  $region12: #{discriminator_forward.6} parent=0 // pred_region
    _
  $region13: #{discriminator_forward.6} parent=0 // pred_fallthru
    _
  %v15 = vld [vmem:[%s0] sm:$0xf]
  %v16 = vld [vmem:[%s0 + $0x4] sm:$0xf]
  %v17 = vld [vmem:[%s0 + $0x8] sm:$0xf]
  %v18 = vld [vmem:[%s0 + $0xc] sm:$0xf]
  %v19 = vld [vmem:[%s0 + $0x10] sm:$0xf]
  %v20 = vld [vmem:[%s0 + $0x14] sm:$0xf]
  %v21 = vld [vmem:[%s0 + $0x18] sm:$0xf]
  %v22 = vld [vmem:[%s0 + $0x1c] sm:$0xf]
  %v23 = vld [vmem:[%s0 + $0x20] sm:$0xf]
  %v24 = vld [vmem:[%s0 + $0x24] sm:$0xf]
  %v25 = vld [vmem:[%s0 + $0x28] sm:$0xf]
  %v26 = vld [vmem:[%s0 + $0x2c] sm:$0xf]
  %v27 = vld [vmem:[%s0 + $0x30] sm:$0xf]
  %v28 = vld [vmem:[%s0 + $0x34] sm:$0xf]
  %v29 = vld [vmem:[%s0 + $0x38] sm:$0xf]
  %v30 = vld [vmem:[%s0 + $0x3c] sm:$0xf]
  %v31 = vld [vmem:[%s1] sm:$0xf]
  %v32 = vld [vmem:[%s1 + $0x4] sm:$0xf]
  %v33 = vld [vmem:[%s1 + $0x8] sm:$0xf]
  %v34 = vld [vmem:[%s1 + $0xc] sm:$0xf]
  %v35 = vld [vmem:[%s1 + $0x10] sm:$0xf]
  %v36 = vld [vmem:[%s1 + $0x14] sm:$0xf]
  %v37 = vld [vmem:[%s1 + $0x18] sm:$0xf]
  %v38 = vld [vmem:[%s1 + $0x1c] sm:$0xf]
  %v39 = vld [vmem:[%s1 + $0x20] sm:$0xf]
  %v40 = vld [vmem:[%s1 + $0x24] sm:$0xf]
  %v41 = vld [vmem:[%s1 + $0x28] sm:$0xf]
  %v42 = vld [vmem:[%s1 + $0x2c] sm:$0xf]
  %v43 = vld [vmem:[%s1 + $0x30] sm:$0xf]
  %v44 = vld [vmem:[%s1 + $0x34] sm:$0xf]
  %v45 = vld [vmem:[%s1 + $0x38] sm:$0xf]
  %v46 = vld [vmem:[%s1 + $0x3c] sm:$0xf]
  %v63 = vunpack.c.l.b16 %v15
  %v64 = vunpack.c.l.b16 %v16
  %v65 = vunpack.c.l.b16 %v17
  %v66 = vunpack.c.l.b16 %v18
  %v67 = vunpack.c.l.b16 %v19
  %v68 = vunpack.c.l.b16 %v20
  %v69 = vunpack.c.l.b16 %v21
  %v70 = vunpack.c.l.b16 %v22
  %v71 = vunpack.c.l.b16 %v23
  %v72 = vunpack.c.l.b16 %v24
  %v73 = vunpack.c.l.b16 %v25
  %v74 = vunpack.c.l.b16 %v26
  %v75 = vunpack.c.l.b16 %v27
  %v76 = vunpack.c.l.b16 %v28
  %v77 = vunpack.c.l.b16 %v29
  %v78 = vunpack.c.l.b16 %v30
  %v79 = vpack.c.b16 %v64, %v63
  %v80 = vpack.c.b16 %v66, %v65
  %v81 = vpack.c.b16 %v68, %v67
  %v82 = vpack.c.b16 %v70, %v69
  %v83 = vpack.c.b16 %v72, %v71
  %v84 = vpack.c.b16 %v74, %v73
  %v85 = vpack.c.b16 %v76, %v75
  %v86 = vpack.c.b16 %v78, %v77
  %v111 = vunpack.c.l.b16 %v31
  %v112 = vunpack.c.l.b16 %v32
  %v113 = vunpack.c.l.b16 %v33
  %v114 = vunpack.c.l.b16 %v34
  %v115 = vunpack.c.l.b16 %v35
  %v116 = vunpack.c.l.b16 %v36
  %v117 = vunpack.c.l.b16 %v37
  %v118 = vunpack.c.l.b16 %v38
  %v119 = vunpack.c.l.b16 %v39
  %v120 = vunpack.c.l.b16 %v40
  %v121 = vunpack.c.l.b16 %v41
  %v122 = vunpack.c.l.b16 %v42
  %v123 = vunpack.c.l.b16 %v43
  %v124 = vunpack.c.l.b16 %v44
  %v125 = vunpack.c.l.b16 %v45
  %v126 = vunpack.c.l.b16 %v46
  %v127 = vpack.c.b16 %v112, %v111
  %v128 = vpack.c.b16 %v114, %v113
  %v129 = vpack.c.b16 %v116, %v115
  %v130 = vpack.c.b16 %v118, %v117
  %v131 = vpack.c.b16 %v120, %v119
  %v132 = vpack.c.b16 %v122, %v121
  %v133 = vpack.c.b16 %v124, %v123
  %v134 = vpack.c.b16 %v126, %v125
  %143 = vmatprep.subr.bf16.mxu0 0
  %144 = vmatpush1.bf16.msra.mxu0 %v127
  %145 = vmatprep.subr.bf16.mxu0 0
  %146 = vmatpush1.bf16.msra.mxu0 %v128
  %147 = vmatprep.subr.bf16.mxu0 0
  %148 = vmatpush1.bf16.msra.mxu0 %v129
  %149 = vmatprep.subr.bf16.mxu0 0
  %150 = vmatpush1.bf16.msra.mxu0 %v130
  %151 = vmatprep.subr.bf16.mxu0 0
  %152 = vmatpush1.bf16.msra.mxu0 %v131
  %153 = vmatprep.subr.bf16.mxu0 0
  %154 = vmatpush1.bf16.msra.mxu0 %v132
  %155 = vmatprep.subr.bf16.mxu0 0
  %156 = vmatpush1.bf16.msra.mxu0 %v133
  %157 = vmatprep.subr.bf16.mxu0 0
  %158 = vmatpush1.bf16.msra.mxu0 %v134
  %159 = vmatprep.subr.bf16.mxu0 0
  %160 = vmatpush1.bf16.msra.mxu0 0
  %161 = vmatprep.subr.bf16.mxu0 0
  %162 = vmatpush1.bf16.msra.mxu0 0
  %163 = vmatprep.subr.bf16.mxu0 0
  %164 = vmatpush1.bf16.msra.mxu0 0
  %165 = vmatprep.subr.bf16.mxu0 0
  %166 = vmatpush1.bf16.msra.mxu0 0
  %167 = vmatprep.subr.bf16.mxu0 0
  %168 = vmatpush1.bf16.msra.mxu0 0
  %169 = vmatprep.subr.bf16.mxu0 0
  %170 = vmatpush1.bf16.msra.mxu0 0
  %171 = vmatprep.subr.bf16.mxu0 0
  %172 = vmatpush1.bf16.msra.mxu0 0
  %173 = vmatprep.subr.bf16.mxu0 0
  %174 = vmatpush1.bf16.msra.mxu0 0
  %175 = vmatprep.mubr.bf16.mxu0 0
  %176 = vmatmul.mubr.bf16.gmra.mrb[0].mxu0 %v79
  %v177 = vpop.f32.mrb[0].mxu0
  %v178 = vadd.f32 0.0, %v177
  %v179 = vpop.f32.mrb[0].mxu0
  %v180 = vpop.f32.mrb[0].mxu0
  %v181 = vadd.f32 0.0, %v180
  %v182 = vpop.f32.mrb[0].mxu0
  %183 = vmatprep.mubr.bf16.mxu0 0
  %184 = vmatmul.mubr.bf16.gmra.mrb[0].mxu0 %v80
  %v185 = vpop.f32.mrb[0].mxu0
  %v186 = vadd.f32 0.0, %v185
  %v187 = vpop.f32.mrb[0].mxu0
  %v188 = vpop.f32.mrb[0].mxu0
  %v189 = vadd.f32 0.0, %v188
  %v190 = vpop.f32.mrb[0].mxu0
  %191 = vmatprep.mubr.bf16.mxu0 0
  %192 = vmatmul.mubr.bf16.gmra.mrb[0].mxu0 %v81
  %v193 = vpop.f32.mrb[0].mxu0
  %v194 = vadd.f32 0.0, %v193
  %v195 = vpop.f32.mrb[0].mxu0
  %v196 = vpop.f32.mrb[0].mxu0
  %v197 = vadd.f32 0.0, %v196
  %v198 = vpop.f32.mrb[0].mxu0
  %199 = vmatprep.mubr.bf16.mxu0 0
  %200 = vmatmul.mubr.bf16.gmra.mrb[0].mxu0 %v82
  %v201 = vpop.f32.mrb[0].mxu0
  %v202 = vadd.f32 0.0, %v201
  %v203 = vpop.f32.mrb[0].mxu0
  %v204 = vpop.f32.mrb[0].mxu0
  %v205 = vadd.f32 0.0, %v204
  %v206 = vpop.f32.mrb[0].mxu0
  %207 = vmatprep.mubr.bf16.mxu0 0
  %208 = vmatmul.mubr.bf16.gmra.mrb[0].mxu0 %v83
  %v209 = vpop.f32.mrb[0].mxu0
  %v210 = vadd.f32 0.0, %v209
  %v211 = vpop.f32.mrb[0].mxu0
  %v212 = vpop.f32.mrb[0].mxu0
  %v213 = vadd.f32 0.0, %v212
  %v214 = vpop.f32.mrb[0].mxu0
  %215 = vmatprep.mubr.bf16.mxu0 0
  %216 = vmatmul.mubr.bf16.gmra.mrb[0].mxu0 %v84
  %v217 = vpop.f32.mrb[0].mxu0
  %v218 = vadd.f32 0.0, %v217
  %v219 = vpop.f32.mrb[0].mxu0
  %v220 = vpop.f32.mrb[0].mxu0
  %v221 = vadd.f32 0.0, %v220
  %v222 = vpop.f32.mrb[0].mxu0
  %223 = vmatprep.mubr.bf16.mxu0 0
  %224 = vmatmul.mubr.bf16.gmra.mrb[0].mxu0 %v85
  %v225 = vpop.f32.mrb[0].mxu0
  %v226 = vadd.f32 0.0, %v225
  %v227 = vpop.f32.mrb[0].mxu0
  %v228 = vpop.f32.mrb[0].mxu0
  %v229 = vadd.f32 0.0, %v228
  %v230 = vpop.f32.mrb[0].mxu0
  %231 = vmatprep.mubr.bf16.mxu0 0
  %232 = vmatmul.mubr.bf16.gmra.mrb[0].mxu0 %v86
  %v233 = vpop.f32.mrb[0].mxu0
  %v234 = vadd.f32 0.0, %v233
  %v235 = vpop.f32.mrb[0].mxu0
  %v236 = vpop.f32.mrb[0].mxu0
  %v237 = vadd.f32 0.0, %v236
  %v238 = vpop.f32.mrb[0].mxu0
  %239 = vdwg.mxu0
  %v240 = vadd.f32 %v178, %v181
  %v241 = vadd.f32 %v240, %v186
  %v242 = vadd.f32 %v241, %v189
  %v243 = vadd.f32 %v242, %v194
  %v244 = vadd.f32 %v243, %v197
  %v245 = vadd.f32 %v244, %v202
  %v246 = vadd.f32 %v245, %v205
  %v247 = vadd.f32 %v246, %v210
  %v248 = vadd.f32 %v247, %v213
  %v249 = vadd.f32 %v248, %v218
  %v250 = vadd.f32 %v249, %v221
  %v251 = vadd.f32 %v250, %v226
  %v252 = vadd.f32 %v251, %v229
  %v253 = vadd.f32 %v252, %v234
  %v254 = vadd.f32 %v253, %v237
  %v255 = vrot.slane %v254, 4
  %v256 = vadd.f32 %v254, %v255
  %v257 = vrot.slane %v256, 2
  %v258 = vadd.f32 %v256, %v257
  %v259 = vrot.slane %v258, 1
  %v260 = vadd.f32 %v258, %v259
  %v261 = vmul.f32 %v260, 0.0078125
  %v262 = vmul.f32 %v178, %v178
  %v263 = vmul.f32 %v181, %v181
  %v264 = vmul.f32 %v186, %v186
  %v265 = vmul.f32 %v189, %v189
  %v266 = vmul.f32 %v194, %v194
  %v267 = vmul.f32 %v197, %v197
  %v268 = vmul.f32 %v202, %v202
  %v269 = vmul.f32 %v205, %v205
  %v270 = vmul.f32 %v210, %v210
  %v271 = vmul.f32 %v213, %v213
  %v272 = vmul.f32 %v218, %v218
  %v273 = vmul.f32 %v221, %v221
  %v274 = vmul.f32 %v226, %v226
  %v275 = vmul.f32 %v229, %v229
  %v276 = vmul.f32 %v234, %v234
  %v277 = vmul.f32 %v237, %v237
  %v278 = vadd.f32 %v262, %v263
  %v279 = vadd.f32 %v278, %v264
  %v280 = vadd.f32 %v279, %v265
  %v281 = vadd.f32 %v280, %v266
  %v282 = vadd.f32 %v281, %v267
  %v283 = vadd.f32 %v282, %v268
  %v284 = vadd.f32 %v283, %v269
  %v285 = vadd.f32 %v284, %v270
  %v286 = vadd.f32 %v285, %v271
  %v287 = vadd.f32 %v286, %v272
  %v288 = vadd.f32 %v287, %v273
  %v289 = vadd.f32 %v288, %v274
  %v290 = vadd.f32 %v289, %v275
  %v291 = vadd.f32 %v290, %v276
  %v292 = vadd.f32 %v291, %v277
  %v293 = vrot.slane %v292, 4
  %v294 = vadd.f32 %v292, %v293
  %v295 = vrot.slane %v294, 2
  %v296 = vadd.f32 %v294, %v295
  %v297 = vrot.slane %v296, 1
  %v298 = vadd.f32 %v296, %v297
  %v299 = vmul.f32 %v298, 0.0078125
  %v300 = vmul.f32 %v261, %v261
  %v301 = vsub.f32 %v299, %v300
  %v302 = vld [vmem:[%s2] sm:$0x1]
  %v303 = vadd.f32 %v301, 1e-05
  %v304 = vrsqrt.pop %v303
  %v305 = vmul.f32 %v302, %v304
  %v306 = vld [vmem:[%s2 + $0x1] sm:$0x1]
  %v307 = vmul.f32 %v261, %v305
  %v308 = vsub.f32 %v306, %v307
  %v309 = vlaneseq
  %v310 = vshrl.u32 %v309, 7
  %v311 = vsub.s32 0, %v310
  %v312 = vrot.slane %v305, %v311
  %v313 = vmul.f32 %v178, %v312
  %v314 = vmul.f32 %v181, %v312
  %v315 = vmul.f32 %v186, %v312
  %v316 = vmul.f32 %v189, %v312
  %v317 = vmul.f32 %v194, %v312
  %v318 = vmul.f32 %v197, %v312
  %v319 = vmul.f32 %v202, %v312
  %v320 = vmul.f32 %v205, %v312
  %v321 = vmul.f32 %v210, %v312
  %v322 = vmul.f32 %v213, %v312
  %v323 = vmul.f32 %v218, %v312
  %v324 = vmul.f32 %v221, %v312
  %v325 = vmul.f32 %v226, %v312
  %v326 = vmul.f32 %v229, %v312
  %v327 = vmul.f32 %v234, %v312
  %v328 = vmul.f32 %v237, %v312
  %v329 = vlaneseq
  %v330 = vshrl.u32 %v329, 7
  %v331 = vsub.s32 0, %v330
  %v332 = vrot.slane %v308, %v331
  %v333 = vadd.f32 %v313, %v332
  %v334 = vadd.f32 %v314, %v332
  %v335 = vadd.f32 %v315, %v332
  %v336 = vadd.f32 %v316, %v332
  %v337 = vadd.f32 %v317, %v332
  %v338 = vadd.f32 %v318, %v332
  %v339 = vadd.f32 %v319, %v332
  %v340 = vadd.f32 %v320, %v332
  %v341 = vadd.f32 %v321, %v332
  %v342 = vadd.f32 %v322, %v332
  %v343 = vadd.f32 %v323, %v332
  %v344 = vadd.f32 %v324, %v332
  %v345 = vadd.f32 %v325, %v332
  %v346 = vadd.f32 %v326, %v332
  %v347 = vadd.f32 %v327, %v332
  %v348 = vadd.f32 %v328, %v332
  %v349 = vmax.f32 %v333, 0.0
  %v350 = vmax.f32 %v334, 0.0
  %v351 = vmax.f32 %v335, 0.0
  %v352 = vmax.f32 %v336, 0.0
  %v353 = vmax.f32 %v337, 0.0
  %v354 = vmax.f32 %v338, 0.0
  %v355 = vmax.f32 %v339, 0.0
  %v356 = vmax.f32 %v340, 0.0
  %v357 = vmax.f32 %v341, 0.0
  %v358 = vmax.f32 %v342, 0.0
  %v359 = vmax.f32 %v343, 0.0
  %v360 = vmax.f32 %v344, 0.0
  %v361 = vmax.f32 %v345, 0.0
  %v362 = vmax.f32 %v346, 0.0
  %v363 = vmax.f32 %v347, 0.0
  %v364 = vmax.f32 %v348, 0.0
  %v365 = vpack.c.bf16 %v350, %v349
  %v366 = vpack.c.bf16 %v352, %v351
  %v367 = vpack.c.bf16 %v354, %v353
  %v368 = vpack.c.bf16 %v356, %v355
  %v369 = vpack.c.bf16 %v358, %v357
  %v370 = vpack.c.bf16 %v360, %v359
  %v371 = vpack.c.bf16 %v362, %v361
  %v372 = vpack.c.bf16 %v364, %v363
  %v381 = vunpack.c.l.b16 %v365
  %v382 = vunpack.c.h.b16 %v365
  %v383 = vunpack.c.l.b16 %v366
  %v384 = vunpack.c.h.b16 %v366
  %v385 = vunpack.c.l.b16 %v367
  %v386 = vunpack.c.h.b16 %v367
  %v387 = vunpack.c.l.b16 %v368
  %v388 = vunpack.c.h.b16 %v368
  %v389 = vunpack.c.l.b16 %v369
  %v390 = vunpack.c.h.b16 %v369
  %v391 = vunpack.c.l.b16 %v370
  %v392 = vunpack.c.h.b16 %v370
  %v393 = vunpack.c.l.b16 %v371
  %v394 = vunpack.c.h.b16 %v371
  %v395 = vunpack.c.l.b16 %v372
  %v396 = vunpack.c.h.b16 %v372
  %v397 = vpack.c.b16 %v381, %v381
  %v398 = vpack.c.b16 %v382, %v382
  %v399 = vpack.c.b16 %v383, %v383
  %v400 = vpack.c.b16 %v384, %v384
  %v401 = vpack.c.b16 %v385, %v385
  %v402 = vpack.c.b16 %v386, %v386
  %v403 = vpack.c.b16 %v387, %v387
  %v404 = vpack.c.b16 %v388, %v388
  %v405 = vpack.c.b16 %v389, %v389
  %v406 = vpack.c.b16 %v390, %v390
  %v407 = vpack.c.b16 %v391, %v391
  %v408 = vpack.c.b16 %v392, %v392
  %v409 = vpack.c.b16 %v393, %v393
  %v410 = vpack.c.b16 %v394, %v394
  %v411 = vpack.c.b16 %v395, %v395
  %v412 = vpack.c.b16 %v396, %v396
  %429 = vst [vmem:[%s3] sm:$0xf] %v397
  %430 = vst [vmem:[%s3 + $0x4] sm:$0xf] %v398
  %431 = vst [vmem:[%s3 + $0x8] sm:$0xf] %v399
  %432 = vst [vmem:[%s3 + $0xc] sm:$0xf] %v400
  %433 = vst [vmem:[%s3 + $0x10] sm:$0xf] %v401
  %434 = vst [vmem:[%s3 + $0x14] sm:$0xf] %v402
  %435 = vst [vmem:[%s3 + $0x18] sm:$0xf] %v403
  %436 = vst [vmem:[%s3 + $0x1c] sm:$0xf] %v404
  %437 = vst [vmem:[%s3 + $0x20] sm:$0xf] %v405
  %438 = vst [vmem:[%s3 + $0x24] sm:$0xf] %v406
  %439 = vst [vmem:[%s3 + $0x28] sm:$0xf] %v407
  %440 = vst [vmem:[%s3 + $0x2c] sm:$0xf] %v408
  %441 = vst [vmem:[%s3 + $0x30] sm:$0xf] %v409
  %442 = vst [vmem:[%s3 + $0x34] sm:$0xf] %v410
  %443 = vst [vmem:[%s3 + $0x38] sm:$0xf] %v411
  %444 = vst [vmem:[%s3 + $0x3c] sm:$0xf] %v412
  // Predicated region
  $region14: #{discriminator_forward.6} parent=0 // pred_check
    _
  $region15: #{discriminator_forward.6} parent=0 // pred_check_branch
    %446 = sbr.rel (0) target = $region17
  $region16: #{discriminator_forward.6} parent=0 // pred_region
    _
  $region17: #{discriminator_forward.6} parent=0 // pred_fallthru
    _
  // Predicated region
  $region18: #{discriminator_forward.6} parent=0 // pred_check
    _
  $region19: #{discriminator_forward.6} parent=0 // pred_check_branch
    %448 = sbr.rel (0) target = $region21
  $region20: #{discriminator_forward.6} parent=0 // pred_region
    _
  $region21: #{discriminator_forward.6} parent=0 // pred_fallthru
    _

// kernel: discriminator_forward.7
$region0: #{discriminator_forward.7}
  #allocation0 [shape = 'u32[]', space=smem, size = 0x4, offset = 0x4, fixed_abs, tag = 'smem constant byte address 0x4 - core index']
  #allocation1 [shape = 'u32[144,128]{1,0:T(1,128)}', space=vmem, size = 0x12000, scoped, tag = 'internal scratch']
  %s0 = inlined_call_operand.vmem [shape: bf16[32,256], index: 0, kind: input, shape index: {}]
  %s1 = inlined_call_operand.vmem [shape: bf16[256,128], index: 1, kind: input, shape index: {}]
  %s2 = inlined_call_operand.vmem [shape: f32[2,128], index: 2, kind: input, shape index: {}]
  %s3 = inlined_call_operand.vmem [shape: bf16[32,128], index: 3, kind: output, shape index: {}]
  %s4 = sld [smem:[#allocation0]]
  $region22: #{discriminator_forward.7} parent=0
    _
  %s6 = ssub.s32 1, %s4
  %s7 = scalar_select 0, %s6, %s4
  // Predicated region
  $region2: #{discriminator_forward.7} parent=0 // pred_check
    _
  $region3: #{discriminator_forward.7} parent=0 // pred_check_branch
    %9 = sbr.rel (0) target = $region5
  $region4: #{discriminator_forward.7} parent=0 // pred_region
    _
  $region5: #{discriminator_forward.7} parent=0 // pred_fallthru
    _
  // Predicated region
  $region6: #{discriminator_forward.7} parent=0 // pred_check
    _
  $region7: #{discriminator_forward.7} parent=0 // pred_check_branch
    %11 = sbr.rel (0) target = $region9
  $region8: #{discriminator_forward.7} parent=0 // pred_region
    _
  $region9: #{discriminator_forward.7} parent=0 // pred_fallthru
    _
  // Predicated region
  $region10: #{discriminator_forward.7} parent=0 // pred_check
    _
  $region11: #{discriminator_forward.7} parent=0 // pred_check_branch
    %13 = sbr.rel (0) target = $region13
  $region12: #{discriminator_forward.7} parent=0 // pred_region
    _
  $region13: #{discriminator_forward.7} parent=0 // pred_fallthru
    _
  %v15 = vld [vmem:[%s0] sm:$0xff]
  %v16 = vld [vmem:[%s0 + $0x8] sm:$0xff]
  %v17 = vld [vmem:[%s0 + $0x10] sm:$0xff]
  %v18 = vld [vmem:[%s0 + $0x18] sm:$0xff]
  %v19 = vld [vmem:[%s1] sm:$0xf]
  %v20 = vld [vmem:[%s1 + $0x4] sm:$0xf]
  %v21 = vld [vmem:[%s1 + $0x8] sm:$0xf]
  %v22 = vld [vmem:[%s1 + $0xc] sm:$0xf]
  %v23 = vld [vmem:[%s1 + $0x10] sm:$0xf]
  %v24 = vld [vmem:[%s1 + $0x14] sm:$0xf]
  %v25 = vld [vmem:[%s1 + $0x18] sm:$0xf]
  %v26 = vld [vmem:[%s1 + $0x1c] sm:$0xf]
  %v27 = vld [vmem:[%s1 + $0x20] sm:$0xf]
  %v28 = vld [vmem:[%s1 + $0x24] sm:$0xf]
  %v29 = vld [vmem:[%s1 + $0x28] sm:$0xf]
  %v30 = vld [vmem:[%s1 + $0x2c] sm:$0xf]
  %v31 = vld [vmem:[%s1 + $0x30] sm:$0xf]
  %v32 = vld [vmem:[%s1 + $0x34] sm:$0xf]
  %v33 = vld [vmem:[%s1 + $0x38] sm:$0xf]
  %v34 = vld [vmem:[%s1 + $0x3c] sm:$0xf]
  %v35 = vld [vmem:[%s1 + $0x40] sm:$0xf]
  %v36 = vld [vmem:[%s1 + $0x44] sm:$0xf]
  %v37 = vld [vmem:[%s1 + $0x48] sm:$0xf]
  %v38 = vld [vmem:[%s1 + $0x4c] sm:$0xf]
  %v39 = vld [vmem:[%s1 + $0x50] sm:$0xf]
  %v40 = vld [vmem:[%s1 + $0x54] sm:$0xf]
  %v41 = vld [vmem:[%s1 + $0x58] sm:$0xf]
  %v42 = vld [vmem:[%s1 + $0x5c] sm:$0xf]
  %v43 = vld [vmem:[%s1 + $0x60] sm:$0xf]
  %v44 = vld [vmem:[%s1 + $0x64] sm:$0xf]
  %v45 = vld [vmem:[%s1 + $0x68] sm:$0xf]
  %v46 = vld [vmem:[%s1 + $0x6c] sm:$0xf]
  %v47 = vld [vmem:[%s1 + $0x70] sm:$0xf]
  %v48 = vld [vmem:[%s1 + $0x74] sm:$0xf]
  %v49 = vld [vmem:[%s1 + $0x78] sm:$0xf]
  %v50 = vld [vmem:[%s1 + $0x7c] sm:$0xf]
  %v55 = vunpack.c.l.b16 %v15
  %v56 = vunpack.c.h.b16 %v15
  %v57 = vunpack.c.l.b16 %v16
  %v58 = vunpack.c.h.b16 %v16
  %v59 = vunpack.c.l.b16 %v17
  %v60 = vunpack.c.h.b16 %v17
  %v61 = vunpack.c.l.b16 %v18
  %v62 = vunpack.c.h.b16 %v18
  %v63 = vpack.c.b16 %v57, %v55
  %v64 = vpack.c.b16 %v58, %v56
  %v65 = vpack.c.b16 %v61, %v59
  %v66 = vpack.c.b16 %v62, %v60
  %v103 = vunpack.c.l.b16 %v19
  %v104 = vunpack.c.l.b16 %v20
  %v105 = vunpack.c.l.b16 %v21
  %v106 = vunpack.c.l.b16 %v22
  %v107 = vunpack.c.l.b16 %v23
  %v108 = vunpack.c.l.b16 %v24
  %v109 = vunpack.c.l.b16 %v25
  %v110 = vunpack.c.l.b16 %v26
  %v111 = vunpack.c.l.b16 %v27
  %v112 = vunpack.c.l.b16 %v28
  %v113 = vunpack.c.l.b16 %v29
  %v114 = vunpack.c.l.b16 %v30
  %v115 = vunpack.c.l.b16 %v31
  %v116 = vunpack.c.l.b16 %v32
  %v117 = vunpack.c.l.b16 %v33
  %v118 = vunpack.c.l.b16 %v34
  %v119 = vunpack.c.l.b16 %v35
  %v120 = vunpack.c.l.b16 %v36
  %v121 = vunpack.c.l.b16 %v37
  %v122 = vunpack.c.l.b16 %v38
  %v123 = vunpack.c.l.b16 %v39
  %v124 = vunpack.c.l.b16 %v40
  %v125 = vunpack.c.l.b16 %v41
  %v126 = vunpack.c.l.b16 %v42
  %v127 = vunpack.c.l.b16 %v43
  %v128 = vunpack.c.l.b16 %v44
  %v129 = vunpack.c.l.b16 %v45
  %v130 = vunpack.c.l.b16 %v46
  %v131 = vunpack.c.l.b16 %v47
  %v132 = vunpack.c.l.b16 %v48
  %v133 = vunpack.c.l.b16 %v49
  %v134 = vunpack.c.l.b16 %v50
  %v135 = vpack.c.b16 %v104, %v103
  %v136 = vpack.c.b16 %v106, %v105
  %v137 = vpack.c.b16 %v108, %v107
  %v138 = vpack.c.b16 %v110, %v109
  %v139 = vpack.c.b16 %v112, %v111
  %v140 = vpack.c.b16 %v114, %v113
  %v141 = vpack.c.b16 %v116, %v115
  %v142 = vpack.c.b16 %v118, %v117
  %v143 = vpack.c.b16 %v120, %v119
  %v144 = vpack.c.b16 %v122, %v121
  %v145 = vpack.c.b16 %v124, %v123
  %v146 = vpack.c.b16 %v126, %v125
  %v147 = vpack.c.b16 %v128, %v127
  %v148 = vpack.c.b16 %v130, %v129
  %v149 = vpack.c.b16 %v132, %v131
  %v150 = vpack.c.b16 %v134, %v133
  %167 = vmatprep.subr.bf16.mxu0 0
  %168 = vmatpush1.bf16.msra.mxu0 %v135
  %169 = vmatprep.subr.bf16.mxu0 0
  %170 = vmatpush1.bf16.msra.mxu0 %v136
  %171 = vmatprep.subr.bf16.mxu0 0
  %172 = vmatpush1.bf16.msra.mxu0 %v137
  %173 = vmatprep.subr.bf16.mxu0 0
  %174 = vmatpush1.bf16.msra.mxu0 %v138
  %175 = vmatprep.subr.bf16.mxu0 0
  %176 = vmatpush1.bf16.msra.mxu0 %v139
  %177 = vmatprep.subr.bf16.mxu0 0
  %178 = vmatpush1.bf16.msra.mxu0 %v140
  %179 = vmatprep.subr.bf16.mxu0 0
  %180 = vmatpush1.bf16.msra.mxu0 %v141
  %181 = vmatprep.subr.bf16.mxu0 0
  %182 = vmatpush1.bf16.msra.mxu0 %v142
  %183 = vmatprep.subr.bf16.mxu0 0
  %184 = vmatpush1.bf16.msra.mxu0 %v143
  %185 = vmatprep.subr.bf16.mxu0 0
  %186 = vmatpush1.bf16.msra.mxu0 %v144
  %187 = vmatprep.subr.bf16.mxu0 0
  %188 = vmatpush1.bf16.msra.mxu0 %v145
  %189 = vmatprep.subr.bf16.mxu0 0
  %190 = vmatpush1.bf16.msra.mxu0 %v146
  %191 = vmatprep.subr.bf16.mxu0 0
  %192 = vmatpush1.bf16.msra.mxu0 %v147
  %193 = vmatprep.subr.bf16.mxu0 0
  %194 = vmatpush1.bf16.msra.mxu0 %v148
  %195 = vmatprep.subr.bf16.mxu0 0
  %196 = vmatpush1.bf16.msra.mxu0 %v149
  %197 = vmatprep.subr.bf16.mxu0 0
  %198 = vmatpush1.bf16.msra.mxu0 %v150
  %199 = vmatprep.mubr.bf16.mxu0 %v64
  %200 = vmatmul.mubr.bf16.gmra.mrb[0].mxu0 %v63
  %v201 = vpop.f32.mrb[0].mxu0
  %v202 = vadd.f32 0.0, %v201
  %v203 = vpop.f32.mrb[0].mxu0
  %v204 = vpop.f32.mrb[0].mxu0
  %v205 = vadd.f32 0.0, %v204
  %v206 = vpop.f32.mrb[0].mxu0
  %207 = vmatprep.mubr.bf16.mxu0 %v66
  %208 = vmatmul.mubr.bf16.gmra.mrb[0].mxu0 %v65
  %v209 = vpop.f32.mrb[0].mxu0
  %v210 = vadd.f32 0.0, %v209
  %v211 = vpop.f32.mrb[0].mxu0
  %v212 = vpop.f32.mrb[0].mxu0
  %v213 = vadd.f32 0.0, %v212
  %v214 = vpop.f32.mrb[0].mxu0
  %215 = vdwg.mxu0
  %v216 = vadd.f32 %v202, %v205
  %v217 = vadd.f32 %v216, %v210
  %v218 = vadd.f32 %v217, %v213
  %v219 = vrot.slane %v218, 4
  %v220 = vadd.f32 %v218, %v219
  %v221 = vrot.slane %v220, 2
  %v222 = vadd.f32 %v220, %v221
  %v223 = vrot.slane %v222, 1
  %v224 = vadd.f32 %v222, %v223
  %v225 = vmul.f32 %v224, 0.03125
  %v226 = vmul.f32 %v202, %v202
  %v227 = vmul.f32 %v205, %v205
  %v228 = vmul.f32 %v210, %v210
  %v229 = vmul.f32 %v213, %v213
  %v230 = vadd.f32 %v226, %v227
  %v231 = vadd.f32 %v230, %v228
  %v232 = vadd.f32 %v231, %v229
  %v233 = vrot.slane %v232, 4
  %v234 = vadd.f32 %v232, %v233
  %v235 = vrot.slane %v234, 2
  %v236 = vadd.f32 %v234, %v235
  %v237 = vrot.slane %v236, 1
  %v238 = vadd.f32 %v236, %v237
  %v239 = vmul.f32 %v238, 0.03125
  %v240 = vmul.f32 %v225, %v225
  %v241 = vsub.f32 %v239, %v240
  %v242 = vld [vmem:[%s2] sm:$0x1]
  %v243 = vadd.f32 %v241, 1e-05
  %v244 = vrsqrt.pop %v243
  %v245 = vmul.f32 %v242, %v244
  %v246 = vld [vmem:[%s2 + $0x1] sm:$0x1]
  %v247 = vmul.f32 %v225, %v245
  %v248 = vsub.f32 %v246, %v247
  %v249 = vlaneseq
  %v250 = vshrl.u32 %v249, 7
  %v251 = vsub.s32 0, %v250
  %v252 = vrot.slane %v245, %v251
  %v253 = vmul.f32 %v202, %v252
  %v254 = vmul.f32 %v205, %v252
  %v255 = vmul.f32 %v210, %v252
  %v256 = vmul.f32 %v213, %v252
  %v257 = vlaneseq
  %v258 = vshrl.u32 %v257, 7
  %v259 = vsub.s32 0, %v258
  %v260 = vrot.slane %v248, %v259
  %v261 = vadd.f32 %v253, %v260
  %v262 = vadd.f32 %v254, %v260
  %v263 = vadd.f32 %v255, %v260
  %v264 = vadd.f32 %v256, %v260
  %v265 = vmax.f32 %v261, 0.0
  %v266 = vmax.f32 %v262, 0.0
  %v267 = vmax.f32 %v263, 0.0
  %v268 = vmax.f32 %v264, 0.0
  %v269 = vpack.c.bf16 %v266, %v265
  %v270 = vpack.c.bf16 %v268, %v267
  %v273 = vunpack.c.l.b16 %v269
  %v274 = vunpack.c.h.b16 %v269
  %v275 = vunpack.c.l.b16 %v270
  %v276 = vunpack.c.h.b16 %v270
  %v277 = vpack.c.b16 %v273, %v273
  %v278 = vpack.c.b16 %v274, %v274
  %v279 = vpack.c.b16 %v275, %v275
  %v280 = vpack.c.b16 %v276, %v276
  %285 = vst [vmem:[%s3] sm:$0xf] %v277
  %286 = vst [vmem:[%s3 + $0x4] sm:$0xf] %v278
  %287 = vst [vmem:[%s3 + $0x8] sm:$0xf] %v279
  %288 = vst [vmem:[%s3 + $0xc] sm:$0xf] %v280
  // Predicated region
  $region14: #{discriminator_forward.7} parent=0 // pred_check
    _
  $region15: #{discriminator_forward.7} parent=0 // pred_check_branch
    %290 = sbr.rel (0) target = $region17
  $region16: #{discriminator_forward.7} parent=0 // pred_region
    _
  $region17: #{discriminator_forward.7} parent=0 // pred_fallthru
    _
  // Predicated region
  $region18: #{discriminator_forward.7} parent=0 // pred_check
    _
  $region19: #{discriminator_forward.7} parent=0 // pred_check_branch
    %292 = sbr.rel (0) target = $region21
  $region20: #{discriminator_forward.7} parent=0 // pred_region
    _
  $region21: #{discriminator_forward.7} parent=0 // pred_fallthru
    _

// kernel: discriminator_forward.8
$region0: #{discriminator_forward.8}
  #allocation0 [shape = 'u32[]', space=smem, size = 0x4, offset = 0x4, fixed_abs, tag = 'smem constant byte address 0x4 - core index']
  #allocation1 [shape = 'u32[144,128]{1,0:T(1,128)}', space=vmem, size = 0x12000, scoped, tag = 'internal scratch']
  %s0 = inlined_call_operand.vmem [shape: bf16[32,512], index: 0, kind: input, shape index: {}]
  %s1 = inlined_call_operand.vmem [shape: bf16[512,128], index: 1, kind: input, shape index: {}]
  %s2 = inlined_call_operand.vmem [shape: f32[2,128], index: 2, kind: input, shape index: {}]
  %s3 = inlined_call_operand.vmem [shape: bf16[32,128], index: 3, kind: output, shape index: {}]
  %s4 = sld [smem:[#allocation0]]
  $region22: #{discriminator_forward.8} parent=0
    _
  %s6 = ssub.s32 1, %s4
  %s7 = scalar_select 0, %s6, %s4
  // Predicated region
  $region2: #{discriminator_forward.8} parent=0 // pred_check
    _
  $region3: #{discriminator_forward.8} parent=0 // pred_check_branch
    %9 = sbr.rel (0) target = $region5
  $region4: #{discriminator_forward.8} parent=0 // pred_region
    _
  $region5: #{discriminator_forward.8} parent=0 // pred_fallthru
    _
  // Predicated region
  $region6: #{discriminator_forward.8} parent=0 // pred_check
    _
  $region7: #{discriminator_forward.8} parent=0 // pred_check_branch
    %11 = sbr.rel (0) target = $region9
  $region8: #{discriminator_forward.8} parent=0 // pred_region
    _
  $region9: #{discriminator_forward.8} parent=0 // pred_fallthru
    _
  // Predicated region
  $region10: #{discriminator_forward.8} parent=0 // pred_check
    _
  $region11: #{discriminator_forward.8} parent=0 // pred_check_branch
    %13 = sbr.rel (0) target = $region13
  $region12: #{discriminator_forward.8} parent=0 // pred_region
    _
  $region13: #{discriminator_forward.8} parent=0 // pred_fallthru
    _
  %v15 = vld [vmem:[%s0] sm:$0xff]
  %v16 = vld [vmem:[%s0 + $0x8] sm:$0xff]
  %v17 = vld [vmem:[%s0 + $0x10] sm:$0xff]
  %v18 = vld [vmem:[%s0 + $0x18] sm:$0xff]
  %v19 = vld [vmem:[%s0 + $0x20] sm:$0xff]
  %v20 = vld [vmem:[%s0 + $0x28] sm:$0xff]
  %v21 = vld [vmem:[%s0 + $0x30] sm:$0xff]
  %v22 = vld [vmem:[%s0 + $0x38] sm:$0xff]
  %v23 = vld [vmem:[%s1] sm:$0xf]
  %v24 = vld [vmem:[%s1 + $0x4] sm:$0xf]
  %v25 = vld [vmem:[%s1 + $0x8] sm:$0xf]
  %v26 = vld [vmem:[%s1 + $0xc] sm:$0xf]
  %v27 = vld [vmem:[%s1 + $0x10] sm:$0xf]
  %v28 = vld [vmem:[%s1 + $0x14] sm:$0xf]
  %v29 = vld [vmem:[%s1 + $0x18] sm:$0xf]
  %v30 = vld [vmem:[%s1 + $0x1c] sm:$0xf]
  %v31 = vld [vmem:[%s1 + $0x20] sm:$0xf]
  %v32 = vld [vmem:[%s1 + $0x24] sm:$0xf]
  %v33 = vld [vmem:[%s1 + $0x28] sm:$0xf]
  %v34 = vld [vmem:[%s1 + $0x2c] sm:$0xf]
  %v35 = vld [vmem:[%s1 + $0x30] sm:$0xf]
  %v36 = vld [vmem:[%s1 + $0x34] sm:$0xf]
  %v37 = vld [vmem:[%s1 + $0x38] sm:$0xf]
  %v38 = vld [vmem:[%s1 + $0x3c] sm:$0xf]
  %v39 = vld [vmem:[%s1 + $0x40] sm:$0xf]
  %v40 = vld [vmem:[%s1 + $0x44] sm:$0xf]
  %v41 = vld [vmem:[%s1 + $0x48] sm:$0xf]
  %v42 = vld [vmem:[%s1 + $0x4c] sm:$0xf]
  %v43 = vld [vmem:[%s1 + $0x50] sm:$0xf]
  %v44 = vld [vmem:[%s1 + $0x54] sm:$0xf]
  %v45 = vld [vmem:[%s1 + $0x58] sm:$0xf]
  %v46 = vld [vmem:[%s1 + $0x5c] sm:$0xf]
  %v47 = vld [vmem:[%s1 + $0x60] sm:$0xf]
  %v48 = vld [vmem:[%s1 + $0x64] sm:$0xf]
  %v49 = vld [vmem:[%s1 + $0x68] sm:$0xf]
  %v50 = vld [vmem:[%s1 + $0x6c] sm:$0xf]
  %v51 = vld [vmem:[%s1 + $0x70] sm:$0xf]
  %v52 = vld [vmem:[%s1 + $0x74] sm:$0xf]
  %v53 = vld [vmem:[%s1 + $0x78] sm:$0xf]
  %v54 = vld [vmem:[%s1 + $0x7c] sm:$0xf]
  %v55 = vld [vmem:[%s1 + $0x80] sm:$0xf]
  %v56 = vld [vmem:[%s1 + $0x84] sm:$0xf]
  %v57 = vld [vmem:[%s1 + $0x88] sm:$0xf]
  %v58 = vld [vmem:[%s1 + $0x8c] sm:$0xf]
  %v59 = vld [vmem:[%s1 + $0x90] sm:$0xf]
  %v60 = vld [vmem:[%s1 + $0x94] sm:$0xf]
  %v61 = vld [vmem:[%s1 + $0x98] sm:$0xf]
  %v62 = vld [vmem:[%s1 + $0x9c] sm:$0xf]
  %v63 = vld [vmem:[%s1 + $0xa0] sm:$0xf]
  %v64 = vld [vmem:[%s1 + $0xa4] sm:$0xf]
  %v65 = vld [vmem:[%s1 + $0xa8] sm:$0xf]
  %v66 = vld [vmem:[%s1 + $0xac] sm:$0xf]
  %v67 = vld [vmem:[%s1 + $0xb0] sm:$0xf]
  %v68 = vld [vmem:[%s1 + $0xb4] sm:$0xf]
  %v69 = vld [vmem:[%s1 + $0xb8] sm:$0xf]
  %v70 = vld [vmem:[%s1 + $0xbc] sm:$0xf]
  %v71 = vld [vmem:[%s1 + $0xc0] sm:$0xf]
  %v72 = vld [vmem:[%s1 + $0xc4] sm:$0xf]
  %v73 = vld [vmem:[%s1 + $0xc8] sm:$0xf]
  %v74 = vld [vmem:[%s1 + $0xcc] sm:$0xf]
  %v75 = vld [vmem:[%s1 + $0xd0] sm:$0xf]
  %v76 = vld [vmem:[%s1 + $0xd4] sm:$0xf]
  %v77 = vld [vmem:[%s1 + $0xd8] sm:$0xf]
  %v78 = vld [vmem:[%s1 + $0xdc] sm:$0xf]
  %v79 = vld [vmem:[%s1 + $0xe0] sm:$0xf]
  %v80 = vld [vmem:[%s1 + $0xe4] sm:$0xf]
  %v81 = vld [vmem:[%s1 + $0xe8] sm:$0xf]
  %v82 = vld [vmem:[%s1 + $0xec] sm:$0xf]
  %v83 = vld [vmem:[%s1 + $0xf0] sm:$0xf]
  %v84 = vld [vmem:[%s1 + $0xf4] sm:$0xf]
  %v85 = vld [vmem:[%s1 + $0xf8] sm:$0xf]
  %v86 = vld [vmem:[%s1 + $0xfc] sm:$0xf]
  %v95 = vunpack.c.l.b16 %v15
  %v96 = vunpack.c.h.b16 %v15
  %v97 = vunpack.c.l.b16 %v16
  %v98 = vunpack.c.h.b16 %v16
  %v99 = vunpack.c.l.b16 %v17
  %v100 = vunpack.c.h.b16 %v17
  %v101 = vunpack.c.l.b16 %v18
  %v102 = vunpack.c.h.b16 %v18
  %v103 = vunpack.c.l.b16 %v19
  %v104 = vunpack.c.h.b16 %v19
  %v105 = vunpack.c.l.b16 %v20
  %v106 = vunpack.c.h.b16 %v20
  %v107 = vunpack.c.l.b16 %v21
  %v108 = vunpack.c.h.b16 %v21
  %v109 = vunpack.c.l.b16 %v22
  %v110 = vunpack.c.h.b16 %v22
  %v111 = vpack.c.b16 %v99, %v95
  %v112 = vpack.c.b16 %v100, %v96
  %v113 = vpack.c.b16 %v101, %v97
  %v114 = vpack.c.b16 %v102, %v98
  %v115 = vpack.c.b16 %v107, %v103
  %v116 = vpack.c.b16 %v108, %v104
  %v117 = vpack.c.b16 %v109, %v105
  %v118 = vpack.c.b16 %v110, %v106
  %v191 = vunpack.c.l.b16 %v23
  %v192 = vunpack.c.l.b16 %v24
  %v193 = vunpack.c.l.b16 %v25
  %v194 = vunpack.c.l.b16 %v26
  %v195 = vunpack.c.l.b16 %v27
  %v196 = vunpack.c.l.b16 %v28
  %v197 = vunpack.c.l.b16 %v29
  %v198 = vunpack.c.l.b16 %v30
  %v199 = vunpack.c.l.b16 %v31
  %v200 = vunpack.c.l.b16 %v32
  %v201 = vunpack.c.l.b16 %v33
  %v202 = vunpack.c.l.b16 %v34
  %v203 = vunpack.c.l.b16 %v35
  %v204 = vunpack.c.l.b16 %v36
  %v205 = vunpack.c.l.b16 %v37
  %v206 = vunpack.c.l.b16 %v38
  %v207 = vunpack.c.l.b16 %v39
  %v208 = vunpack.c.l.b16 %v40
  %v209 = vunpack.c.l.b16 %v41
  %v210 = vunpack.c.l.b16 %v42
  %v211 = vunpack.c.l.b16 %v43
  %v212 = vunpack.c.l.b16 %v44
  %v213 = vunpack.c.l.b16 %v45
  %v214 = vunpack.c.l.b16 %v46
  %v215 = vunpack.c.l.b16 %v47
  %v216 = vunpack.c.l.b16 %v48
  %v217 = vunpack.c.l.b16 %v49
  %v218 = vunpack.c.l.b16 %v50
  %v219 = vunpack.c.l.b16 %v51
  %v220 = vunpack.c.l.b16 %v52
  %v221 = vunpack.c.l.b16 %v53
  %v222 = vunpack.c.l.b16 %v54
  %v223 = vunpack.c.l.b16 %v55
  %v224 = vunpack.c.l.b16 %v56
  %v225 = vunpack.c.l.b16 %v57
  %v226 = vunpack.c.l.b16 %v58
  %v227 = vunpack.c.l.b16 %v59
  %v228 = vunpack.c.l.b16 %v60
  %v229 = vunpack.c.l.b16 %v61
  %v230 = vunpack.c.l.b16 %v62
  %v231 = vunpack.c.l.b16 %v63
  %v232 = vunpack.c.l.b16 %v64
  %v233 = vunpack.c.l.b16 %v65
  %v234 = vunpack.c.l.b16 %v66
  %v235 = vunpack.c.l.b16 %v67
  %v236 = vunpack.c.l.b16 %v68
  %v237 = vunpack.c.l.b16 %v69
  %v238 = vunpack.c.l.b16 %v70
  %v239 = vunpack.c.l.b16 %v71
  %v240 = vunpack.c.l.b16 %v72
  %v241 = vunpack.c.l.b16 %v73
  %v242 = vunpack.c.l.b16 %v74
  %v243 = vunpack.c.l.b16 %v75
  %v244 = vunpack.c.l.b16 %v76
  %v245 = vunpack.c.l.b16 %v77
  %v246 = vunpack.c.l.b16 %v78
  %v247 = vunpack.c.l.b16 %v79
  %v248 = vunpack.c.l.b16 %v80
  %v249 = vunpack.c.l.b16 %v81
  %v250 = vunpack.c.l.b16 %v82
  %v251 = vunpack.c.l.b16 %v83
  %v252 = vunpack.c.l.b16 %v84
  %v253 = vunpack.c.l.b16 %v85
  %v254 = vunpack.c.l.b16 %v86
  %v255 = vpack.c.b16 %v192, %v191
  %v256 = vpack.c.b16 %v194, %v193
  %v257 = vpack.c.b16 %v196, %v195
  %v258 = vpack.c.b16 %v198, %v197
  %v259 = vpack.c.b16 %v200, %v199
  %v260 = vpack.c.b16 %v202, %v201
  %v261 = vpack.c.b16 %v204, %v203
  %v262 = vpack.c.b16 %v206, %v205
  %v263 = vpack.c.b16 %v208, %v207
  %v264 = vpack.c.b16 %v210, %v209
  %v265 = vpack.c.b16 %v212, %v211
  %v266 = vpack.c.b16 %v214, %v213
  %v267 = vpack.c.b16 %v216, %v215
  %v268 = vpack.c.b16 %v218, %v217
  %v269 = vpack.c.b16 %v220, %v219
  %v270 = vpack.c.b16 %v222, %v221
  %v271 = vpack.c.b16 %v224, %v223
  %v272 = vpack.c.b16 %v226, %v225
  %v273 = vpack.c.b16 %v228, %v227
  %v274 = vpack.c.b16 %v230, %v229
  %v275 = vpack.c.b16 %v232, %v231
  %v276 = vpack.c.b16 %v234, %v233
  %v277 = vpack.c.b16 %v236, %v235
  %v278 = vpack.c.b16 %v238, %v237
  %v279 = vpack.c.b16 %v240, %v239
  %v280 = vpack.c.b16 %v242, %v241
  %v281 = vpack.c.b16 %v244, %v243
  %v282 = vpack.c.b16 %v246, %v245
  %v283 = vpack.c.b16 %v248, %v247
  %v284 = vpack.c.b16 %v250, %v249
  %v285 = vpack.c.b16 %v252, %v251
  %v286 = vpack.c.b16 %v254, %v253
  %319 = vmatprep.subr.bf16.mxu0 0
  %320 = vmatpush1.bf16.msra.mxu0 %v255
  %321 = vmatprep.subr.bf16.mxu0 0
  %322 = vmatpush1.bf16.msra.mxu0 %v256
  %323 = vmatprep.subr.bf16.mxu0 0
  %324 = vmatpush1.bf16.msra.mxu0 %v257
  %325 = vmatprep.subr.bf16.mxu0 0
  %326 = vmatpush1.bf16.msra.mxu0 %v258
  %327 = vmatprep.subr.bf16.mxu0 0
  %328 = vmatpush1.bf16.msra.mxu0 %v259
  %329 = vmatprep.subr.bf16.mxu0 0
  %330 = vmatpush1.bf16.msra.mxu0 %v260
  %331 = vmatprep.subr.bf16.mxu0 0
  %332 = vmatpush1.bf16.msra.mxu0 %v261
  %333 = vmatprep.subr.bf16.mxu0 0
  %334 = vmatpush1.bf16.msra.mxu0 %v262
  %335 = vmatprep.subr.bf16.mxu0 0
  %336 = vmatpush1.bf16.msra.mxu0 %v263
  %337 = vmatprep.subr.bf16.mxu0 0
  %338 = vmatpush1.bf16.msra.mxu0 %v264
  %339 = vmatprep.subr.bf16.mxu0 0
  %340 = vmatpush1.bf16.msra.mxu0 %v265
  %341 = vmatprep.subr.bf16.mxu0 0
  %342 = vmatpush1.bf16.msra.mxu0 %v266
  %343 = vmatprep.subr.bf16.mxu0 0
  %344 = vmatpush1.bf16.msra.mxu0 %v267
  %345 = vmatprep.subr.bf16.mxu0 0
  %346 = vmatpush1.bf16.msra.mxu0 %v268
  %347 = vmatprep.subr.bf16.mxu0 0
  %348 = vmatpush1.bf16.msra.mxu0 %v269
  %349 = vmatprep.subr.bf16.mxu0 0
  %350 = vmatpush1.bf16.msra.mxu0 %v270
  %351 = vmatprep.mubr.bf16.mxu0 %v112
  %352 = vmatmul.mubr.bf16.gmra.mrb[0].mxu0 %v111
  %v353 = vpop.f32.mrb[0].mxu0
  %v354 = vadd.f32 0.0, %v353
  %v355 = vpop.f32.mrb[0].mxu0
  %v356 = vpop.f32.mrb[0].mxu0
  %v357 = vadd.f32 0.0, %v356
  %v358 = vpop.f32.mrb[0].mxu0
  %359 = vmatprep.mubr.bf16.mxu0 %v116
  %360 = vmatmul.mubr.bf16.gmra.mrb[0].mxu0 %v115
  %v361 = vpop.f32.mrb[0].mxu0
  %v362 = vadd.f32 0.0, %v361
  %v363 = vpop.f32.mrb[0].mxu0
  %v364 = vpop.f32.mrb[0].mxu0
  %v365 = vadd.f32 0.0, %v364
  %v366 = vpop.f32.mrb[0].mxu0
  %367 = vdwg.mxu0
  %368 = vmatprep.subr.bf16.mxu0 0
  %369 = vmatpush1.bf16.msra.mxu0 %v271
  %370 = vmatprep.subr.bf16.mxu0 0
  %371 = vmatpush1.bf16.msra.mxu0 %v272
  %372 = vmatprep.subr.bf16.mxu0 0
  %373 = vmatpush1.bf16.msra.mxu0 %v273
  %374 = vmatprep.subr.bf16.mxu0 0
  %375 = vmatpush1.bf16.msra.mxu0 %v274
  %376 = vmatprep.subr.bf16.mxu0 0
  %377 = vmatpush1.bf16.msra.mxu0 %v275
  %378 = vmatprep.subr.bf16.mxu0 0
  %379 = vmatpush1.bf16.msra.mxu0 %v276
  %380 = vmatprep.subr.bf16.mxu0 0
  %381 = vmatpush1.bf16.msra.mxu0 %v277
  %382 = vmatprep.subr.bf16.mxu0 0
  %383 = vmatpush1.bf16.msra.mxu0 %v278
  %384 = vmatprep.subr.bf16.mxu0 0
  %385 = vmatpush1.bf16.msra.mxu0 %v279
  %386 = vmatprep.subr.bf16.mxu0 0
  %387 = vmatpush1.bf16.msra.mxu0 %v280
  %388 = vmatprep.subr.bf16.mxu0 0
  %389 = vmatpush1.bf16.msra.mxu0 %v281
  %390 = vmatprep.subr.bf16.mxu0 0
  %391 = vmatpush1.bf16.msra.mxu0 %v282
  %392 = vmatprep.subr.bf16.mxu0 0
  %393 = vmatpush1.bf16.msra.mxu0 %v283
  %394 = vmatprep.subr.bf16.mxu0 0
  %395 = vmatpush1.bf16.msra.mxu0 %v284
  %396 = vmatprep.subr.bf16.mxu0 0
  %397 = vmatpush1.bf16.msra.mxu0 %v285
  %398 = vmatprep.subr.bf16.mxu0 0
  %399 = vmatpush1.bf16.msra.mxu0 %v286
  %400 = vmatprep.mubr.bf16.mxu0 %v114
  %401 = vmatmul.mubr.bf16.gmra.mrb[0].mxu0 %v113
  %v402 = vpop.f32.mrb[0].mxu0
  %v403 = vadd.f32 %v354, %v402
  %v404 = vpop.f32.mrb[0].mxu0
  %v405 = vpop.f32.mrb[0].mxu0
  %v406 = vadd.f32 %v357, %v405
  %v407 = vpop.f32.mrb[0].mxu0
  %408 = vmatprep.mubr.bf16.mxu0 %v118
  %409 = vmatmul.mubr.bf16.gmra.mrb[0].mxu0 %v117
  %v410 = vpop.f32.mrb[0].mxu0
  %v411 = vadd.f32 %v362, %v410
  %v412 = vpop.f32.mrb[0].mxu0
  %v413 = vpop.f32.mrb[0].mxu0
  %v414 = vadd.f32 %v365, %v413
  %v415 = vpop.f32.mrb[0].mxu0
  %416 = vdwg.mxu0
  %v417 = vadd.f32 %v403, %v406
  %v418 = vadd.f32 %v417, %v411
  %v419 = vadd.f32 %v418, %v414
  %v420 = vrot.slane %v419, 4
  %v421 = vadd.f32 %v419, %v420
  %v422 = vrot.slane %v421, 2
  %v423 = vadd.f32 %v421, %v422
  %v424 = vrot.slane %v423, 1
  %v425 = vadd.f32 %v423, %v424
  %v426 = vmul.f32 %v425, 0.055555556
  %v427 = vmul.f32 %v403, %v403
  %v428 = vmul.f32 %v406, %v406
  %v429 = vmul.f32 %v411, %v411
  %v430 = vmul.f32 %v414, %v414
  %v431 = vadd.f32 %v427, %v428
  %v432 = vadd.f32 %v431, %v429
  %v433 = vadd.f32 %v432, %v430
  %v434 = vrot.slane %v433, 4
  %v435 = vadd.f32 %v433, %v434
  %v436 = vrot.slane %v435, 2
  %v437 = vadd.f32 %v435, %v436
  %v438 = vrot.slane %v437, 1
  %v439 = vadd.f32 %v437, %v438
  %v440 = vmul.f32 %v439, 0.055555556
  %v441 = vmul.f32 %v426, %v426
  %v442 = vsub.f32 %v440, %v441
  %v443 = vld [vmem:[%s2] sm:$0x1]
  %v444 = vadd.f32 %v442, 1e-05
  %v445 = vrsqrt.pop %v444
  %v446 = vmul.f32 %v443, %v445
  %v447 = vld [vmem:[%s2 + $0x1] sm:$0x1]
  %v448 = vmul.f32 %v426, %v446
  %v449 = vsub.f32 %v447, %v448
  %v450 = vlaneseq
  %v451 = vshrl.u32 %v450, 7
  %v452 = vsub.s32 0, %v451
  %v453 = vrot.slane %v446, %v452
  %v454 = vmul.f32 %v403, %v453
  %v455 = vmul.f32 %v406, %v453
  %v456 = vmul.f32 %v411, %v453
  %v457 = vmul.f32 %v414, %v453
  %v458 = vlaneseq
  %v459 = vshrl.u32 %v458, 7
  %v460 = vsub.s32 0, %v459
  %v461 = vrot.slane %v449, %v460
  %v462 = vadd.f32 %v454, %v461
  %v463 = vadd.f32 %v455, %v461
  %v464 = vadd.f32 %v456, %v461
  %v465 = vadd.f32 %v457, %v461
  %v466 = vmax.f32 %v462, 0.0
  %v467 = vmax.f32 %v463, 0.0
  %v468 = vmax.f32 %v464, 0.0
  %v469 = vmax.f32 %v465, 0.0
  %v470 = vpack.c.bf16 %v467, %v466
  %v471 = vpack.c.bf16 %v469, %v468
  %v474 = vunpack.c.l.b16 %v470
  %v475 = vunpack.c.h.b16 %v470
  %v476 = vunpack.c.l.b16 %v471
  %v477 = vunpack.c.h.b16 %v471
  %v478 = vpack.c.b16 %v474, %v474
  %v479 = vpack.c.b16 %v475, %v475
  %v480 = vpack.c.b16 %v476, %v476
  %v481 = vpack.c.b16 %v477, %v477
  %486 = vst [vmem:[%s3] sm:$0xf] %v478
  %487 = vst [vmem:[%s3 + $0x4] sm:$0xf] %v479
  %488 = vst [vmem:[%s3 + $0x8] sm:$0xf] %v480
  %489 = vst [vmem:[%s3 + $0xc] sm:$0xf] %v481
  // Predicated region
  $region14: #{discriminator_forward.8} parent=0 // pred_check
    _
  $region15: #{discriminator_forward.8} parent=0 // pred_check_branch
    %491 = sbr.rel (0) target = $region17
  $region16: #{discriminator_forward.8} parent=0 // pred_region
    _
  $region17: #{discriminator_forward.8} parent=0 // pred_fallthru
    _
  // Predicated region
  $region18: #{discriminator_forward.8} parent=0 // pred_check
    _
  $region19: #{discriminator_forward.8} parent=0 // pred_check_branch
    %493 = sbr.rel (0) target = $region21
  $region20: #{discriminator_forward.8} parent=0 // pred_region
    _
  $region21: #{discriminator_forward.8} parent=0 // pred_fallthru
    _

// kernel: discriminator_forward.9
$region0: #{discriminator_forward.9}
  #allocation0 [shape = 'u32[]', space=smem, size = 0x4, offset = 0x4, fixed_abs, tag = 'smem constant byte address 0x4 - core index']
  #allocation1 [shape = 'u32[144,128]{1,0:T(1,128)}', space=vmem, size = 0x12000, scoped, tag = 'internal scratch']
  %s0 = inlined_call_operand.vmem [shape: bf16[16,1024], index: 0, kind: input, shape index: {}]
  %s1 = inlined_call_operand.vmem [shape: bf16[1024,128], index: 1, kind: input, shape index: {}]
  %s2 = inlined_call_operand.vmem [shape: f32[1,128], index: 2, kind: input, shape index: {}]
  %s3 = inlined_call_operand.vmem [shape: f32[16,128], index: 3, kind: output, shape index: {}]
  %s4 = sld [smem:[#allocation0]]
  $region22: #{discriminator_forward.9} parent=0
    _
  %s6 = ssub.s32 1, %s4
  %s7 = scalar_select 0, %s6, %s4
  // Predicated region
  $region2: #{discriminator_forward.9} parent=0 // pred_check
    _
  $region3: #{discriminator_forward.9} parent=0 // pred_check_branch
    %9 = sbr.rel (0) target = $region5
  $region4: #{discriminator_forward.9} parent=0 // pred_region
    _
  $region5: #{discriminator_forward.9} parent=0 // pred_fallthru
    _
  // Predicated region
  $region6: #{discriminator_forward.9} parent=0 // pred_check
    _
  $region7: #{discriminator_forward.9} parent=0 // pred_check_branch
    %11 = sbr.rel (0) target = $region9
  $region8: #{discriminator_forward.9} parent=0 // pred_region
    _
  $region9: #{discriminator_forward.9} parent=0 // pred_fallthru
    _
  // Predicated region
  $region10: #{discriminator_forward.9} parent=0 // pred_check
    _
  $region11: #{discriminator_forward.9} parent=0 // pred_check_branch
    %13 = sbr.rel (0) target = $region13
  $region12: #{discriminator_forward.9} parent=0 // pred_region
    _
  $region13: #{discriminator_forward.9} parent=0 // pred_fallthru
    _
  %v15 = vld [vmem:[%s0] sm:$0xff]
  %v16 = vld [vmem:[%s0 + $0x8] sm:$0xff]
  %v17 = vld [vmem:[%s0 + $0x10] sm:$0xff]
  %v18 = vld [vmem:[%s0 + $0x18] sm:$0xff]
  %v19 = vld [vmem:[%s0 + $0x20] sm:$0xff]
  %v20 = vld [vmem:[%s0 + $0x28] sm:$0xff]
  %v21 = vld [vmem:[%s0 + $0x30] sm:$0xff]
  %v22 = vld [vmem:[%s0 + $0x38] sm:$0xff]
  %v23 = vld [vmem:[%s1] sm:$0xf]
  %v24 = vld [vmem:[%s1 + $0x4] sm:$0xf]
  %v25 = vld [vmem:[%s1 + $0x8] sm:$0xf]
  %v26 = vld [vmem:[%s1 + $0xc] sm:$0xf]
  %v27 = vld [vmem:[%s1 + $0x10] sm:$0xf]
  %v28 = vld [vmem:[%s1 + $0x14] sm:$0xf]
  %v29 = vld [vmem:[%s1 + $0x18] sm:$0xf]
  %v30 = vld [vmem:[%s1 + $0x1c] sm:$0xf]
  %v31 = vld [vmem:[%s1 + $0x20] sm:$0xf]
  %v32 = vld [vmem:[%s1 + $0x24] sm:$0xf]
  %v33 = vld [vmem:[%s1 + $0x28] sm:$0xf]
  %v34 = vld [vmem:[%s1 + $0x2c] sm:$0xf]
  %v35 = vld [vmem:[%s1 + $0x30] sm:$0xf]
  %v36 = vld [vmem:[%s1 + $0x34] sm:$0xf]
  %v37 = vld [vmem:[%s1 + $0x38] sm:$0xf]
  %v38 = vld [vmem:[%s1 + $0x3c] sm:$0xf]
  %v39 = vld [vmem:[%s1 + $0x40] sm:$0xf]
  %v40 = vld [vmem:[%s1 + $0x44] sm:$0xf]
  %v41 = vld [vmem:[%s1 + $0x48] sm:$0xf]
  %v42 = vld [vmem:[%s1 + $0x4c] sm:$0xf]
  %v43 = vld [vmem:[%s1 + $0x50] sm:$0xf]
  %v44 = vld [vmem:[%s1 + $0x54] sm:$0xf]
  %v45 = vld [vmem:[%s1 + $0x58] sm:$0xf]
  %v46 = vld [vmem:[%s1 + $0x5c] sm:$0xf]
  %v47 = vld [vmem:[%s1 + $0x60] sm:$0xf]
  %v48 = vld [vmem:[%s1 + $0x64] sm:$0xf]
  %v49 = vld [vmem:[%s1 + $0x68] sm:$0xf]
  %v50 = vld [vmem:[%s1 + $0x6c] sm:$0xf]
  %v51 = vld [vmem:[%s1 + $0x70] sm:$0xf]
  %v52 = vld [vmem:[%s1 + $0x74] sm:$0xf]
  %v53 = vld [vmem:[%s1 + $0x78] sm:$0xf]
  %v54 = vld [vmem:[%s1 + $0x7c] sm:$0xf]
  %v55 = vld [vmem:[%s1 + $0x80] sm:$0xf]
  %v56 = vld [vmem:[%s1 + $0x84] sm:$0xf]
  %v57 = vld [vmem:[%s1 + $0x88] sm:$0xf]
  %v58 = vld [vmem:[%s1 + $0x8c] sm:$0xf]
  %v59 = vld [vmem:[%s1 + $0x90] sm:$0xf]
  %v60 = vld [vmem:[%s1 + $0x94] sm:$0xf]
  %v61 = vld [vmem:[%s1 + $0x98] sm:$0xf]
  %v62 = vld [vmem:[%s1 + $0x9c] sm:$0xf]
  %v63 = vld [vmem:[%s1 + $0xa0] sm:$0xf]
  %v64 = vld [vmem:[%s1 + $0xa4] sm:$0xf]
  %v65 = vld [vmem:[%s1 + $0xa8] sm:$0xf]
  %v66 = vld [vmem:[%s1 + $0xac] sm:$0xf]
  %v67 = vld [vmem:[%s1 + $0xb0] sm:$0xf]
  %v68 = vld [vmem:[%s1 + $0xb4] sm:$0xf]
  %v69 = vld [vmem:[%s1 + $0xb8] sm:$0xf]
  %v70 = vld [vmem:[%s1 + $0xbc] sm:$0xf]
  %v71 = vld [vmem:[%s1 + $0xc0] sm:$0xf]
  %v72 = vld [vmem:[%s1 + $0xc4] sm:$0xf]
  %v73 = vld [vmem:[%s1 + $0xc8] sm:$0xf]
  %v74 = vld [vmem:[%s1 + $0xcc] sm:$0xf]
  %v75 = vld [vmem:[%s1 + $0xd0] sm:$0xf]
  %v76 = vld [vmem:[%s1 + $0xd4] sm:$0xf]
  %v77 = vld [vmem:[%s1 + $0xd8] sm:$0xf]
  %v78 = vld [vmem:[%s1 + $0xdc] sm:$0xf]
  %v79 = vld [vmem:[%s1 + $0xe0] sm:$0xf]
  %v80 = vld [vmem:[%s1 + $0xe4] sm:$0xf]
  %v81 = vld [vmem:[%s1 + $0xe8] sm:$0xf]
  %v82 = vld [vmem:[%s1 + $0xec] sm:$0xf]
  %v83 = vld [vmem:[%s1 + $0xf0] sm:$0xf]
  %v84 = vld [vmem:[%s1 + $0xf4] sm:$0xf]
  %v85 = vld [vmem:[%s1 + $0xf8] sm:$0xf]
  %v86 = vld [vmem:[%s1 + $0xfc] sm:$0xf]
  %v87 = vld [vmem:[%s1 + $0x100] sm:$0xf]
  %v88 = vld [vmem:[%s1 + $0x104] sm:$0xf]
  %v89 = vld [vmem:[%s1 + $0x108] sm:$0xf]
  %v90 = vld [vmem:[%s1 + $0x10c] sm:$0xf]
  %v91 = vld [vmem:[%s1 + $0x110] sm:$0xf]
  %v92 = vld [vmem:[%s1 + $0x114] sm:$0xf]
  %v93 = vld [vmem:[%s1 + $0x118] sm:$0xf]
  %v94 = vld [vmem:[%s1 + $0x11c] sm:$0xf]
  %v95 = vld [vmem:[%s1 + $0x120] sm:$0xf]
  %v96 = vld [vmem:[%s1 + $0x124] sm:$0xf]
  %v97 = vld [vmem:[%s1 + $0x128] sm:$0xf]
  %v98 = vld [vmem:[%s1 + $0x12c] sm:$0xf]
  %v99 = vld [vmem:[%s1 + $0x130] sm:$0xf]
  %v100 = vld [vmem:[%s1 + $0x134] sm:$0xf]
  %v101 = vld [vmem:[%s1 + $0x138] sm:$0xf]
  %v102 = vld [vmem:[%s1 + $0x13c] sm:$0xf]
  %v103 = vld [vmem:[%s1 + $0x140] sm:$0xf]
  %v104 = vld [vmem:[%s1 + $0x144] sm:$0xf]
  %v105 = vld [vmem:[%s1 + $0x148] sm:$0xf]
  %v106 = vld [vmem:[%s1 + $0x14c] sm:$0xf]
  %v107 = vld [vmem:[%s1 + $0x150] sm:$0xf]
  %v108 = vld [vmem:[%s1 + $0x154] sm:$0xf]
  %v109 = vld [vmem:[%s1 + $0x158] sm:$0xf]
  %v110 = vld [vmem:[%s1 + $0x15c] sm:$0xf]
  %v111 = vld [vmem:[%s1 + $0x160] sm:$0xf]
  %v112 = vld [vmem:[%s1 + $0x164] sm:$0xf]
  %v113 = vld [vmem:[%s1 + $0x168] sm:$0xf]
  %v114 = vld [vmem:[%s1 + $0x16c] sm:$0xf]
  %v115 = vld [vmem:[%s1 + $0x170] sm:$0xf]
  %v116 = vld [vmem:[%s1 + $0x174] sm:$0xf]
  %v117 = vld [vmem:[%s1 + $0x178] sm:$0xf]
  %v118 = vld [vmem:[%s1 + $0x17c] sm:$0xf]
  %v119 = vld [vmem:[%s1 + $0x180] sm:$0xf]
  %v120 = vld [vmem:[%s1 + $0x184] sm:$0xf]
  %v121 = vld [vmem:[%s1 + $0x188] sm:$0xf]
  %v122 = vld [vmem:[%s1 + $0x18c] sm:$0xf]
  %v123 = vld [vmem:[%s1 + $0x190] sm:$0xf]
  %v124 = vld [vmem:[%s1 + $0x194] sm:$0xf]
  %v125 = vld [vmem:[%s1 + $0x198] sm:$0xf]
  %v126 = vld [vmem:[%s1 + $0x19c] sm:$0xf]
  %v127 = vld [vmem:[%s1 + $0x1a0] sm:$0xf]
  %v128 = vld [vmem:[%s1 + $0x1a4] sm:$0xf]
  %v129 = vld [vmem:[%s1 + $0x1a8] sm:$0xf]
  %v130 = vld [vmem:[%s1 + $0x1ac] sm:$0xf]
  %v131 = vld [vmem:[%s1 + $0x1b0] sm:$0xf]
  %v132 = vld [vmem:[%s1 + $0x1b4] sm:$0xf]
  %v133 = vld [vmem:[%s1 + $0x1b8] sm:$0xf]
  %v134 = vld [vmem:[%s1 + $0x1bc] sm:$0xf]
  %v135 = vld [vmem:[%s1 + $0x1c0] sm:$0xf]
  %v136 = vld [vmem:[%s1 + $0x1c4] sm:$0xf]
  %v137 = vld [vmem:[%s1 + $0x1c8] sm:$0xf]
  %v138 = vld [vmem:[%s1 + $0x1cc] sm:$0xf]
  %v139 = vld [vmem:[%s1 + $0x1d0] sm:$0xf]
  %v140 = vld [vmem:[%s1 + $0x1d4] sm:$0xf]
  %v141 = vld [vmem:[%s1 + $0x1d8] sm:$0xf]
  %v142 = vld [vmem:[%s1 + $0x1dc] sm:$0xf]
  %v143 = vld [vmem:[%s1 + $0x1e0] sm:$0xf]
  %v144 = vld [vmem:[%s1 + $0x1e4] sm:$0xf]
  %v145 = vld [vmem:[%s1 + $0x1e8] sm:$0xf]
  %v146 = vld [vmem:[%s1 + $0x1ec] sm:$0xf]
  %v147 = vld [vmem:[%s1 + $0x1f0] sm:$0xf]
  %v148 = vld [vmem:[%s1 + $0x1f4] sm:$0xf]
  %v149 = vld [vmem:[%s1 + $0x1f8] sm:$0xf]
  %v150 = vld [vmem:[%s1 + $0x1fc] sm:$0xf]
  %v151 = vld [vmem:[%s2] sm:$0x1]
  %v153 = vlaneseq
  %v154 = vshrl.u32 %v153, 7
  %v155 = vsub.s32 0, %v154
  %v156 = vrot.slane %v151, %v155
  %v166 = vunpack.c.l.b16 %v15
  %v167 = vunpack.c.h.b16 %v15
  %v168 = vunpack.c.l.b16 %v16
  %v169 = vunpack.c.h.b16 %v16
  %v170 = vunpack.c.l.b16 %v17
  %v171 = vunpack.c.h.b16 %v17
  %v172 = vunpack.c.l.b16 %v18
  %v173 = vunpack.c.h.b16 %v18
  %v174 = vunpack.c.l.b16 %v19
  %v175 = vunpack.c.h.b16 %v19
  %v176 = vunpack.c.l.b16 %v20
  %v177 = vunpack.c.h.b16 %v20
  %v178 = vunpack.c.l.b16 %v21
  %v179 = vunpack.c.h.b16 %v21
  %v180 = vunpack.c.l.b16 %v22
  %v181 = vunpack.c.h.b16 %v22
  %v182 = vpack.c.b16 %v174, %v166
  %v183 = vpack.c.b16 %v175, %v167
  %v184 = vpack.c.b16 %v176, %v168
  %v185 = vpack.c.b16 %v177, %v169
  %v186 = vpack.c.b16 %v178, %v170
  %v187 = vpack.c.b16 %v179, %v171
  %v188 = vpack.c.b16 %v180, %v172
  %v189 = vpack.c.b16 %v181, %v173
  %v326 = vunpack.c.l.b16 %v23
  %v327 = vunpack.c.l.b16 %v24
  %v328 = vunpack.c.l.b16 %v25
  %v329 = vunpack.c.l.b16 %v26
  %v330 = vunpack.c.l.b16 %v27
  %v331 = vunpack.c.l.b16 %v28
  %v332 = vunpack.c.l.b16 %v29
  %v333 = vunpack.c.l.b16 %v30
  %v334 = vunpack.c.l.b16 %v31
  %v335 = vunpack.c.l.b16 %v32
  %v336 = vunpack.c.l.b16 %v33
  %v337 = vunpack.c.l.b16 %v34
  %v338 = vunpack.c.l.b16 %v35
  %v339 = vunpack.c.l.b16 %v36
  %v340 = vunpack.c.l.b16 %v37
  %v341 = vunpack.c.l.b16 %v38
  %v342 = vunpack.c.l.b16 %v39
  %v343 = vunpack.c.l.b16 %v40
  %v344 = vunpack.c.l.b16 %v41
  %v345 = vunpack.c.l.b16 %v42
  %v346 = vunpack.c.l.b16 %v43
  %v347 = vunpack.c.l.b16 %v44
  %v348 = vunpack.c.l.b16 %v45
  %v349 = vunpack.c.l.b16 %v46
  %v350 = vunpack.c.l.b16 %v47
  %v351 = vunpack.c.l.b16 %v48
  %v352 = vunpack.c.l.b16 %v49
  %v353 = vunpack.c.l.b16 %v50
  %v354 = vunpack.c.l.b16 %v51
  %v355 = vunpack.c.l.b16 %v52
  %v356 = vunpack.c.l.b16 %v53
  %v357 = vunpack.c.l.b16 %v54
  %v358 = vunpack.c.l.b16 %v55
  %v359 = vunpack.c.l.b16 %v56
  %v360 = vunpack.c.l.b16 %v57
  %v361 = vunpack.c.l.b16 %v58
  %v362 = vunpack.c.l.b16 %v59
  %v363 = vunpack.c.l.b16 %v60
  %v364 = vunpack.c.l.b16 %v61
  %v365 = vunpack.c.l.b16 %v62
  %v366 = vunpack.c.l.b16 %v63
  %v367 = vunpack.c.l.b16 %v64
  %v368 = vunpack.c.l.b16 %v65
  %v369 = vunpack.c.l.b16 %v66
  %v370 = vunpack.c.l.b16 %v67
  %v371 = vunpack.c.l.b16 %v68
  %v372 = vunpack.c.l.b16 %v69
  %v373 = vunpack.c.l.b16 %v70
  %v374 = vunpack.c.l.b16 %v71
  %v375 = vunpack.c.l.b16 %v72
  %v376 = vunpack.c.l.b16 %v73
  %v377 = vunpack.c.l.b16 %v74
  %v378 = vunpack.c.l.b16 %v75
  %v379 = vunpack.c.l.b16 %v76
  %v380 = vunpack.c.l.b16 %v77
  %v381 = vunpack.c.l.b16 %v78
  %v382 = vunpack.c.l.b16 %v79
  %v383 = vunpack.c.l.b16 %v80
  %v384 = vunpack.c.l.b16 %v81
  %v385 = vunpack.c.l.b16 %v82
  %v386 = vunpack.c.l.b16 %v83
  %v387 = vunpack.c.l.b16 %v84
  %v388 = vunpack.c.l.b16 %v85
  %v389 = vunpack.c.l.b16 %v86
  %v390 = vunpack.c.l.b16 %v87
  %v391 = vunpack.c.l.b16 %v88
  %v392 = vunpack.c.l.b16 %v89
  %v393 = vunpack.c.l.b16 %v90
  %v394 = vunpack.c.l.b16 %v91
  %v395 = vunpack.c.l.b16 %v92
  %v396 = vunpack.c.l.b16 %v93
  %v397 = vunpack.c.l.b16 %v94
  %v398 = vunpack.c.l.b16 %v95
  %v399 = vunpack.c.l.b16 %v96
  %v400 = vunpack.c.l.b16 %v97
  %v401 = vunpack.c.l.b16 %v98
  %v402 = vunpack.c.l.b16 %v99
  %v403 = vunpack.c.l.b16 %v100
  %v404 = vunpack.c.l.b16 %v101
  %v405 = vunpack.c.l.b16 %v102
  %v406 = vunpack.c.l.b16 %v103
  %v407 = vunpack.c.l.b16 %v104
  %v408 = vunpack.c.l.b16 %v105
  %v409 = vunpack.c.l.b16 %v106
  %v410 = vunpack.c.l.b16 %v107
  %v411 = vunpack.c.l.b16 %v108
  %v412 = vunpack.c.l.b16 %v109
  %v413 = vunpack.c.l.b16 %v110
  %v414 = vunpack.c.l.b16 %v111
  %v415 = vunpack.c.l.b16 %v112
  %v416 = vunpack.c.l.b16 %v113
  %v417 = vunpack.c.l.b16 %v114
  %v418 = vunpack.c.l.b16 %v115
  %v419 = vunpack.c.l.b16 %v116
  %v420 = vunpack.c.l.b16 %v117
  %v421 = vunpack.c.l.b16 %v118
  %v422 = vunpack.c.l.b16 %v119
  %v423 = vunpack.c.l.b16 %v120
  %v424 = vunpack.c.l.b16 %v121
  %v425 = vunpack.c.l.b16 %v122
  %v426 = vunpack.c.l.b16 %v123
  %v427 = vunpack.c.l.b16 %v124
  %v428 = vunpack.c.l.b16 %v125
  %v429 = vunpack.c.l.b16 %v126
  %v430 = vunpack.c.l.b16 %v127
  %v431 = vunpack.c.l.b16 %v128
  %v432 = vunpack.c.l.b16 %v129
  %v433 = vunpack.c.l.b16 %v130
  %v434 = vunpack.c.l.b16 %v131
  %v435 = vunpack.c.l.b16 %v132
  %v436 = vunpack.c.l.b16 %v133
  %v437 = vunpack.c.l.b16 %v134
  %v438 = vunpack.c.l.b16 %v135
  %v439 = vunpack.c.l.b16 %v136
  %v440 = vunpack.c.l.b16 %v137
  %v441 = vunpack.c.l.b16 %v138
  %v442 = vunpack.c.l.b16 %v139
  %v443 = vunpack.c.l.b16 %v140
  %v444 = vunpack.c.l.b16 %v141
  %v445 = vunpack.c.l.b16 %v142
  %v446 = vunpack.c.l.b16 %v143
  %v447 = vunpack.c.l.b16 %v144
  %v448 = vunpack.c.l.b16 %v145
  %v449 = vunpack.c.l.b16 %v146
  %v450 = vunpack.c.l.b16 %v147
  %v451 = vunpack.c.l.b16 %v148
  %v452 = vunpack.c.l.b16 %v149
  %v453 = vunpack.c.l.b16 %v150
  %v454 = vpack.c.b16 %v327, %v326
  %v455 = vpack.c.b16 %v329, %v328
  %v456 = vpack.c.b16 %v331, %v330
  %v457 = vpack.c.b16 %v333, %v332
  %v458 = vpack.c.b16 %v335, %v334
  %v459 = vpack.c.b16 %v337, %v336
  %v460 = vpack.c.b16 %v339, %v338
  %v461 = vpack.c.b16 %v341, %v340
  %v462 = vpack.c.b16 %v343, %v342
  %v463 = vpack.c.b16 %v345, %v344
  %v464 = vpack.c.b16 %v347, %v346
  %v465 = vpack.c.b16 %v349, %v348
  %v466 = vpack.c.b16 %v351, %v350
  %v467 = vpack.c.b16 %v353, %v352
  %v468 = vpack.c.b16 %v355, %v354
  %v469 = vpack.c.b16 %v357, %v356
  %v470 = vpack.c.b16 %v359, %v358
  %v471 = vpack.c.b16 %v361, %v360
  %v472 = vpack.c.b16 %v363, %v362
  %v473 = vpack.c.b16 %v365, %v364
  %v474 = vpack.c.b16 %v367, %v366
  %v475 = vpack.c.b16 %v369, %v368
  %v476 = vpack.c.b16 %v371, %v370
  %v477 = vpack.c.b16 %v373, %v372
  %v478 = vpack.c.b16 %v375, %v374
  %v479 = vpack.c.b16 %v377, %v376
  %v480 = vpack.c.b16 %v379, %v378
  %v481 = vpack.c.b16 %v381, %v380
  %v482 = vpack.c.b16 %v383, %v382
  %v483 = vpack.c.b16 %v385, %v384
  %v484 = vpack.c.b16 %v387, %v386
  %v485 = vpack.c.b16 %v389, %v388
  %v486 = vpack.c.b16 %v391, %v390
  %v487 = vpack.c.b16 %v393, %v392
  %v488 = vpack.c.b16 %v395, %v394
  %v489 = vpack.c.b16 %v397, %v396
  %v490 = vpack.c.b16 %v399, %v398
  %v491 = vpack.c.b16 %v401, %v400
  %v492 = vpack.c.b16 %v403, %v402
  %v493 = vpack.c.b16 %v405, %v404
  %v494 = vpack.c.b16 %v407, %v406
  %v495 = vpack.c.b16 %v409, %v408
  %v496 = vpack.c.b16 %v411, %v410
  %v497 = vpack.c.b16 %v413, %v412
  %v498 = vpack.c.b16 %v415, %v414
  %v499 = vpack.c.b16 %v417, %v416
  %v500 = vpack.c.b16 %v419, %v418
  %v501 = vpack.c.b16 %v421, %v420
  %v502 = vpack.c.b16 %v423, %v422
  %v503 = vpack.c.b16 %v425, %v424
  %v504 = vpack.c.b16 %v427, %v426
  %v505 = vpack.c.b16 %v429, %v428
  %v506 = vpack.c.b16 %v431, %v430
  %v507 = vpack.c.b16 %v433, %v432
  %v508 = vpack.c.b16 %v435, %v434
  %v509 = vpack.c.b16 %v437, %v436
  %v510 = vpack.c.b16 %v439, %v438
  %v511 = vpack.c.b16 %v441, %v440
  %v512 = vpack.c.b16 %v443, %v442
  %v513 = vpack.c.b16 %v445, %v444
  %v514 = vpack.c.b16 %v447, %v446
  %v515 = vpack.c.b16 %v449, %v448
  %v516 = vpack.c.b16 %v451, %v450
  %v517 = vpack.c.b16 %v453, %v452
  %582 = vmatprep.subr.bf16.mxu0 0
  %583 = vmatpush1.bf16.msra.mxu0 %v454
  %584 = vmatprep.subr.bf16.mxu0 0
  %585 = vmatpush1.bf16.msra.mxu0 %v455
  %586 = vmatprep.subr.bf16.mxu0 0
  %587 = vmatpush1.bf16.msra.mxu0 %v456
  %588 = vmatprep.subr.bf16.mxu0 0
  %589 = vmatpush1.bf16.msra.mxu0 %v457
  %590 = vmatprep.subr.bf16.mxu0 0
  %591 = vmatpush1.bf16.msra.mxu0 %v458
  %592 = vmatprep.subr.bf16.mxu0 0
  %593 = vmatpush1.bf16.msra.mxu0 %v459
  %594 = vmatprep.subr.bf16.mxu0 0
  %595 = vmatpush1.bf16.msra.mxu0 %v460
  %596 = vmatprep.subr.bf16.mxu0 0
  %597 = vmatpush1.bf16.msra.mxu0 %v461
  %598 = vmatprep.subr.bf16.mxu0 0
  %599 = vmatpush1.bf16.msra.mxu0 %v462
  %600 = vmatprep.subr.bf16.mxu0 0
  %601 = vmatpush1.bf16.msra.mxu0 %v463
  %602 = vmatprep.subr.bf16.mxu0 0
  %603 = vmatpush1.bf16.msra.mxu0 %v464
  %604 = vmatprep.subr.bf16.mxu0 0
  %605 = vmatpush1.bf16.msra.mxu0 %v465
  %606 = vmatprep.subr.bf16.mxu0 0
  %607 = vmatpush1.bf16.msra.mxu0 %v466
  %608 = vmatprep.subr.bf16.mxu0 0
  %609 = vmatpush1.bf16.msra.mxu0 %v467
  %610 = vmatprep.subr.bf16.mxu0 0
  %611 = vmatpush1.bf16.msra.mxu0 %v468
  %612 = vmatprep.subr.bf16.mxu0 0
  %613 = vmatpush1.bf16.msra.mxu0 %v469
  %614 = vmatprep.mubr.bf16.mxu0 %v183
  %615 = vmatmul.mubr.bf16.gmra.mrb[0].mxu0 %v182
  %v616 = vpop.f32.mrb[0].mxu0
  %v617 = vadd.f32 %v156, %v616
  %v618 = vpop.f32.mrb[0].mxu0
  %v619 = vpop.f32.mrb[0].mxu0
  %v620 = vadd.f32 %v156, %v619
  %v621 = vpop.f32.mrb[0].mxu0
  %622 = vdwg.mxu0
  %623 = vmatprep.subr.bf16.mxu0 0
  %624 = vmatpush1.bf16.msra.mxu0 %v470
  %625 = vmatprep.subr.bf16.mxu0 0
  %626 = vmatpush1.bf16.msra.mxu0 %v471
  %627 = vmatprep.subr.bf16.mxu0 0
  %628 = vmatpush1.bf16.msra.mxu0 %v472
  %629 = vmatprep.subr.bf16.mxu0 0
  %630 = vmatpush1.bf16.msra.mxu0 %v473
  %631 = vmatprep.subr.bf16.mxu0 0
  %632 = vmatpush1.bf16.msra.mxu0 %v474
  %633 = vmatprep.subr.bf16.mxu0 0
  %634 = vmatpush1.bf16.msra.mxu0 %v475
  %635 = vmatprep.subr.bf16.mxu0 0
  %636 = vmatpush1.bf16.msra.mxu0 %v476
  %637 = vmatprep.subr.bf16.mxu0 0
  %638 = vmatpush1.bf16.msra.mxu0 %v477
  %639 = vmatprep.subr.bf16.mxu0 0
  %640 = vmatpush1.bf16.msra.mxu0 %v478
  %641 = vmatprep.subr.bf16.mxu0 0
  %642 = vmatpush1.bf16.msra.mxu0 %v479
  %643 = vmatprep.subr.bf16.mxu0 0
  %644 = vmatpush1.bf16.msra.mxu0 %v480
  %645 = vmatprep.subr.bf16.mxu0 0
  %646 = vmatpush1.bf16.msra.mxu0 %v481
  %647 = vmatprep.subr.bf16.mxu0 0
  %648 = vmatpush1.bf16.msra.mxu0 %v482
  %649 = vmatprep.subr.bf16.mxu0 0
  %650 = vmatpush1.bf16.msra.mxu0 %v483
  %651 = vmatprep.subr.bf16.mxu0 0
  %652 = vmatpush1.bf16.msra.mxu0 %v484
  %653 = vmatprep.subr.bf16.mxu0 0
  %654 = vmatpush1.bf16.msra.mxu0 %v485
  %655 = vmatprep.mubr.bf16.mxu0 %v185
  %656 = vmatmul.mubr.bf16.gmra.mrb[0].mxu0 %v184
  %v657 = vpop.f32.mrb[0].mxu0
  %v658 = vadd.f32 %v617, %v657
  %v659 = vpop.f32.mrb[0].mxu0
  %v660 = vpop.f32.mrb[0].mxu0
  %v661 = vadd.f32 %v620, %v660
  %v662 = vpop.f32.mrb[0].mxu0
  %663 = vdwg.mxu0
  %664 = vmatprep.subr.bf16.mxu0 0
  %665 = vmatpush1.bf16.msra.mxu0 %v486
  %666 = vmatprep.subr.bf16.mxu0 0
  %667 = vmatpush1.bf16.msra.mxu0 %v487
  %668 = vmatprep.subr.bf16.mxu0 0
  %669 = vmatpush1.bf16.msra.mxu0 %v488
  %670 = vmatprep.subr.bf16.mxu0 0
  %671 = vmatpush1.bf16.msra.mxu0 %v489
  %672 = vmatprep.subr.bf16.mxu0 0
  %673 = vmatpush1.bf16.msra.mxu0 %v490
  %674 = vmatprep.subr.bf16.mxu0 0
  %675 = vmatpush1.bf16.msra.mxu0 %v491
  %676 = vmatprep.subr.bf16.mxu0 0
  %677 = vmatpush1.bf16.msra.mxu0 %v492
  %678 = vmatprep.subr.bf16.mxu0 0
  %679 = vmatpush1.bf16.msra.mxu0 %v493
  %680 = vmatprep.subr.bf16.mxu0 0
  %681 = vmatpush1.bf16.msra.mxu0 %v494
  %682 = vmatprep.subr.bf16.mxu0 0
  %683 = vmatpush1.bf16.msra.mxu0 %v495
  %684 = vmatprep.subr.bf16.mxu0 0
  %685 = vmatpush1.bf16.msra.mxu0 %v496
  %686 = vmatprep.subr.bf16.mxu0 0
  %687 = vmatpush1.bf16.msra.mxu0 %v497
  %688 = vmatprep.subr.bf16.mxu0 0
  %689 = vmatpush1.bf16.msra.mxu0 %v498
  %690 = vmatprep.subr.bf16.mxu0 0
  %691 = vmatpush1.bf16.msra.mxu0 %v499
  %692 = vmatprep.subr.bf16.mxu0 0
  %693 = vmatpush1.bf16.msra.mxu0 %v500
  %694 = vmatprep.subr.bf16.mxu0 0
  %695 = vmatpush1.bf16.msra.mxu0 %v501
  %696 = vmatprep.mubr.bf16.mxu0 %v187
  %697 = vmatmul.mubr.bf16.gmra.mrb[0].mxu0 %v186
  %v698 = vpop.f32.mrb[0].mxu0
  %v699 = vadd.f32 %v658, %v698
  %v700 = vpop.f32.mrb[0].mxu0
  %v701 = vpop.f32.mrb[0].mxu0
  %v702 = vadd.f32 %v661, %v701
  %v703 = vpop.f32.mrb[0].mxu0
  %704 = vdwg.mxu0
  %705 = vmatprep.subr.bf16.mxu0 0
  %706 = vmatpush1.bf16.msra.mxu0 %v502
  %707 = vmatprep.subr.bf16.mxu0 0
  %708 = vmatpush1.bf16.msra.mxu0 %v503
  %709 = vmatprep.subr.bf16.mxu0 0
  %710 = vmatpush1.bf16.msra.mxu0 %v504
  %711 = vmatprep.subr.bf16.mxu0 0
  %712 = vmatpush1.bf16.msra.mxu0 %v505
  %713 = vmatprep.subr.bf16.mxu0 0
  %714 = vmatpush1.bf16.msra.mxu0 %v506
  %715 = vmatprep.subr.bf16.mxu0 0
  %716 = vmatpush1.bf16.msra.mxu0 %v507
  %717 = vmatprep.subr.bf16.mxu0 0
  %718 = vmatpush1.bf16.msra.mxu0 %v508
  %719 = vmatprep.subr.bf16.mxu0 0
  %720 = vmatpush1.bf16.msra.mxu0 %v509
  %721 = vmatprep.subr.bf16.mxu0 0
  %722 = vmatpush1.bf16.msra.mxu0 %v510
  %723 = vmatprep.subr.bf16.mxu0 0
  %724 = vmatpush1.bf16.msra.mxu0 %v511
  %725 = vmatprep.subr.bf16.mxu0 0
  %726 = vmatpush1.bf16.msra.mxu0 %v512
  %727 = vmatprep.subr.bf16.mxu0 0
  %728 = vmatpush1.bf16.msra.mxu0 %v513
  %729 = vmatprep.subr.bf16.mxu0 0
  %730 = vmatpush1.bf16.msra.mxu0 %v514
  %731 = vmatprep.subr.bf16.mxu0 0
  %732 = vmatpush1.bf16.msra.mxu0 %v515
  %733 = vmatprep.subr.bf16.mxu0 0
  %734 = vmatpush1.bf16.msra.mxu0 %v516
  %735 = vmatprep.subr.bf16.mxu0 0
  %736 = vmatpush1.bf16.msra.mxu0 %v517
  %737 = vmatprep.mubr.bf16.mxu0 %v189
  %738 = vmatmul.mubr.bf16.gmra.mrb[0].mxu0 %v188
  %v739 = vpop.f32.mrb[0].mxu0
  %v740 = vadd.f32 %v699, %v739
  %v741 = vpop.f32.mrb[0].mxu0
  %v742 = vpop.f32.mrb[0].mxu0
  %v743 = vadd.f32 %v702, %v742
  %v744 = vpop.f32.mrb[0].mxu0
  %745 = vdwg.mxu0
  %746 = vst [vmem:[%s3] sm:$0xff] %v740
  %747 = vst [vmem:[%s3 + $0x8] sm:$0xff] %v743
  // Predicated region
  $region14: #{discriminator_forward.9} parent=0 // pred_check
    _
  $region15: #{discriminator_forward.9} parent=0 // pred_check_branch
    %749 = sbr.rel (0) target = $region17
  $region16: #{discriminator_forward.9} parent=0 // pred_region
    _
  $region17: #{discriminator_forward.9} parent=0 // pred_fallthru
    _
  // Predicated region
  $region18: #{discriminator_forward.9} parent=0 // pred_check
    _
  $region19: #{discriminator_forward.9} parent=0 // pred_check_branch
    %751 = sbr.rel (0) target = $region21
  $region20: #{discriminator_forward.9} parent=0 // pred_region
    _
  $region21: #{discriminator_forward.9} parent=0 // pred_fallthru
    _

</llo_original>
